<compile_context>
chip_gen: v6e
topology: v6e:2x2x1
jax: 0.10.0
libtpu: 0.0.40
codegen_flags: <defaults>
</compile_context>

<pallas_src>
import jax
import jax.numpy as jnp
from jax import lax
from jax.experimental import pallas as pl
from jax.experimental.pallas import tpu as pltpu

_EPS = 1e-5


def gnn_kernel(x_ref, ea_ref, gath_ref, pool_ref,
               wn_ref, we_ref, ball_ref, cs_ref, csh_ref,
               w1_ref, b1_ref, w2_ref, b2_ref, w3_ref, b3_ref,
               out_ref):
    F = x_ref.shape[1]
    F2 = 2 * F
    E = ea_ref.shape[0]

    x = x_ref[...]                       # (N, F)  f32 node features / residual stream
    gath = gath_ref[...]                 # (2E, N) bf16, rows = [one_hot(dst); one_hot(src)]
    gdst = gath[:E]                      # (E, N)  bf16 one-hot of edge targets i

    # Edge-attr contribution + bias for all 4 layers at once: (E, D) @ (D, 8F).
    # edge_attr is layer-invariant, so this replaces 4 per-layer matmuls + adds.
    pre_e = (jnp.dot(ea_ref[...], we_ref[...], preferred_element_type=jnp.float32)
             + ball_ref[...])            # (E, 8F)

    # 4 CGConv layers (unrolled).
    for l in range(4):
        # Fused gather: [x_i; x_j] = [gdst; gsrc] @ x   -> (2E, F), bf16 MXU, f32 acc.
        xij = jnp.dot(gath, x.astype(jnp.bfloat16),
                      preferred_element_type=jnp.float32)
        x_i = xij[:E]
        x_j = xij[E:]

        # Fused lin_f|lin_s on the node parts; edge part comes from pre_e slice.
        wn = wn_ref[l]                   # (2F, 2F): rows [:F] for x_i, [F:] for x_j
        pre = (jnp.dot(x_i, wn[:F], preferred_element_type=jnp.float32)
               + jnp.dot(x_j, wn[F:], preferred_element_type=jnp.float32)
               + pre_e[:, l * F2:(l + 1) * F2])                          # (E, 2F)
        msg = jax.nn.sigmoid(pre[:, :F]) * jax.nn.softplus(pre[:, F:])   # (E, F)

        # Scatter-add to targets: contract the E dim of gdst with the E dim of msg.
        aggr = lax.dot_general(gdst, msg.astype(jnp.bfloat16),
                               dimension_numbers=(((0,), (0,)), ((), ())),
                               preferred_element_type=jnp.float32)        # (N, F)

        # Inference BatchNorm pre-folded to scale/shift (single FMA) + residual.
        x = x + aggr * cs_ref[l][None, :] + csh_ref[l][None, :]

    # global_mean_pool as a (B, N) @ (N, F) matmul.
    pooled = jnp.dot(pool_ref[...], x, preferred_element_type=jnp.float32)   # (B, F)

    # MLP head: BN1/BN2 already folded into w1/b1 and w2/b2 on the host.
    h = jnp.maximum(
        jnp.dot(pooled, w1_ref[...], preferred_element_type=jnp.float32) + b1_ref[...],
        0.0)
    h = jnp.maximum(
        jnp.dot(h, w2_ref[...], preferred_element_type=jnp.float32) + b2_ref[...],
        0.0)
    out_ref[...] = (jnp.dot(h, w3_ref[...], preferred_element_type=jnp.float32)
                    + b3_ref[...])


def gnn_forward(x, edge_index, edge_attr, batch, params, num_graphs):
    """Glue: build dense gather/pool matrices, fold BN, call the Pallas kernel."""
    N, F = x.shape
    src = edge_index[0]                                       # j (neighbor / source)
    dst = edge_index[1]                                       # i (center / target)

    # Stacked one-hot [gdst; gsrc]: one buffer serves gather (both halves) and
    # scatter-add (gdst half). bf16 is exact for 0/1 values and halves VMEM.
    gdst = jax.nn.one_hot(dst, N, dtype=jnp.bfloat16)         # (E, N)
    gsrc = jax.nn.one_hot(src, N, dtype=jnp.bfloat16)         # (E, N)
    gath = jnp.concatenate([gdst, gsrc], axis=0)              # (2E, N)

    onehot_b = jax.nn.one_hot(batch, num_graphs, dtype=jnp.float32)   # (N, B)
    counts = jnp.maximum(jnp.sum(onehot_b, axis=0), 1.0)
    pool = (onehot_b / counts[None, :]).T                     # (B, N) mean-pool matrix

    # --- host-side parameter folding (inference mode) ---
    # CGConv: fuse lin_f / lin_s along the output dim. Split the fused weight into
    # the node block (per-layer, used in-kernel) and the edge block (stacked over
    # layers into one (D, 8F) matrix for the single edge matmul).
    wfs = jnp.concatenate([params["wf"], params["ws"]], axis=-1)       # (4, 2F+D, 2F)
    bfs = jnp.concatenate([params["bf"], params["bs"]], axis=-1)       # (4, 2F)
    wn = wfs[:, :2 * F, :]                                             # (4, 2F, 2F)
    we = jnp.transpose(wfs[:, 2 * F:, :], (1, 0, 2)).reshape(-1, 8 * F)  # (D, 8F)
    ball = bfs.reshape(1, 8 * F)                                       # (1, 8F)
    # Conv BN folded into scale/shift.
    cs = params["cg"] * lax.rsqrt(params["cv"] + _EPS)                 # (4, F)
    csh = params["cb"] - params["cm"] * cs                             # (4, F)
    # Head: fold BN1/BN2 into lin1/lin2.
    s1 = params["g1"] * lax.rsqrt(params["v1"] + _EPS)                 # (1, H1)
    w1 = params["w1"] * s1
    b1 = (params["b1"] - params["m1"]) * s1 + params["be1"]
    s2 = params["g2"] * lax.rsqrt(params["v2"] + _EPS)                 # (1, H2)
    w2 = params["w2"] * s2
    b2 = (params["b2"] - params["m2"]) * s2 + params["be2"]

    inputs = [x.astype(jnp.float32), edge_attr.astype(jnp.float32),
              gath, pool,
              wn, we, ball, cs, csh,
              w1, b1, w2, b2, params["w3"], params["b3"]]
    out_dim = params["w3"].shape[1]

    # Scoped-VMEM budget: resident bytes + headroom, capped below v7x's 64 MiB.
    resident = sum(int(a.size) * a.dtype.itemsize for a in inputs)
    resident += num_graphs * out_dim * 4
    vmem_limit = min((32 << 20) + 2 * resident, 56 << 20)

    return pl.pallas_call(
        gnn_kernel,
        out_shape=jax.ShapeDtypeStruct((num_graphs, out_dim), jnp.float32),
        in_specs=[pl.BlockSpec(memory_space=pltpu.MemorySpace.VMEM)] * len(inputs),
        out_specs=pl.BlockSpec(memory_space=pltpu.MemorySpace.VMEM),
        compiler_params=pltpu.CompilerParams(vmem_limit_bytes=vmem_limit),
    )(*inputs)


def make_params(key, input_dims, edge_dim, hidden_dim, out_dim):
    F, D = input_dims, edge_dim
    H1, H2 = hidden_dim, hidden_dim // 2
    zdim = 2 * F + D
    keys = jax.random.split(key, 16)

    def n(k, shape, scale=0.1):
        return (scale * jax.random.normal(k, shape)).astype(jnp.float32)

    params = {
        # CGConv lin_f / lin_s weights stacked over 4 layers: (4, 2F+D, F)
        "wf": n(keys[0], (4, zdim, F)),
        "bf": n(keys[1], (4, F)),
        "ws": n(keys[2], (4, zdim, F)),
        "bs": n(keys[3], (4, F)),
        # CGConv BatchNorm1d (eval mode): gamma, beta, running_mean, running_var
        "cg": jnp.ones((4, F), jnp.float32) + n(keys[4], (4, F), 0.01),
        "cb": n(keys[5], (4, F), 0.01),
        "cm": jnp.zeros((4, F), jnp.float32),
        "cv": jnp.ones((4, F), jnp.float32),
        # MLP head
        "w1": n(keys[6], (F, H1)), "b1": n(keys[7], (1, H1)),
        "g1": jnp.ones((1, H1), jnp.float32), "be1": jnp.zeros((1, H1), jnp.float32),
        "m1": jnp.zeros((1, H1), jnp.float32), "v1": jnp.ones((1, H1), jnp.float32),
        "w2": n(keys[8], (H1, H2)), "b2": n(keys[9], (1, H2)),
        "g2": jnp.ones((1, H2), jnp.float32), "be2": jnp.zeros((1, H2), jnp.float32),
        "m2": jnp.zeros((1, H2), jnp.float32), "v2": jnp.ones((1, H2), jnp.float32),
        "w3": n(keys[10], (H2, out_dim)), "b3": n(keys[11], (1, out_dim)),
    }
    return params


if __name__ == "__main__":
    input_dims, edge_dim, hidden_dim, out_dim = 8, 4, 32, 4
    N, B = 16, 2                       # 16 nodes, 2 graphs of 8 nodes each

    key = jax.random.PRNGKey(0)
    kx, ke, kp = jax.random.split(key, 3)

    x = jax.random.normal(kx, (N, input_dims), dtype=jnp.float32)

    # Bidirectional ring per graph -> E = 32 edges. row0 = source j, row1 = target i.
    src, dst = [], []
    for g in range(B):
        base = g * 8
        for i in range(8):
            a, b = base + i, base + (i + 1) % 8
            src += [a, b]
            dst += [b, a]
    edge_index = jnp.array([src, dst], dtype=jnp.int32)     # (2, 32)
    E = edge_index.shape[1]
    edge_attr = jax.random.normal(ke, (E, edge_dim), dtype=jnp.float32)
    batch = jnp.array([0] * 8 + [1] * 8, dtype=jnp.int32)

    params = make_params(kp, input_dims, edge_dim, hidden_dim, out_dim)

    out = gnn_forward(x, edge_index, edge_attr, batch, params, num_graphs=B)
    out = jax.block_until_ready(out)
    assert out.shape == (B, out_dim) and out.dtype == jnp.float32
    assert bool(jnp.all(jnp.isfinite(out)))
    print("KERNEL_OK")
</pallas_src>

<mosaic_0001>
module attributes {stable_mosaic.version = 11 : i64} {
  func.func @gnn_kernel(%arg0: memref<16x8xf32, #tpu.memory_space<vmem>>, %arg1: memref<32x4xf32, #tpu.memory_space<vmem>>, %arg2: memref<64x16xbf16, #tpu.memory_space<vmem>>, %arg3: memref<2x16xf32, #tpu.memory_space<vmem>>, %arg4: memref<4x16x16xf32, #tpu.memory_space<vmem>>, %arg5: memref<4x64xf32, #tpu.memory_space<vmem>>, %arg6: memref<1x64xf32, #tpu.memory_space<vmem>>, %arg7: memref<4x8xf32, #tpu.memory_space<vmem>>, %arg8: memref<4x8xf32, #tpu.memory_space<vmem>>, %arg9: memref<8x32xf32, #tpu.memory_space<vmem>>, %arg10: memref<1x32xf32, #tpu.memory_space<vmem>>, %arg11: memref<32x16xf32, #tpu.memory_space<vmem>>, %arg12: memref<1x16xf32, #tpu.memory_space<vmem>>, %arg13: memref<16x4xf32, #tpu.memory_space<vmem>>, %arg14: memref<1x4xf32, #tpu.memory_space<vmem>>, %arg15: memref<2x4xf32, #tpu.memory_space<vmem>>) attributes {dimension_semantics = [], scalar_prefetch = 0 : i64, scratch_operands = 0 : i64, tpu.core_type = #tpu.core_type<tc>} {
    %c0 = arith.constant 0 : index
    %c0_0 = arith.constant 0 : index
    %0 = vector.load %arg0[%c0, %c0_0] : memref<16x8xf32, #tpu.memory_space<vmem>>, vector<16x8xf32>
    %c0_1 = arith.constant 0 : index
    %c0_2 = arith.constant 0 : index
    %1 = vector.load %arg2[%c0_1, %c0_2] : memref<64x16xbf16, #tpu.memory_space<vmem>>, vector<64x16xbf16>
    %2 = vector.extract_strided_slice %1 {offsets = [0, 0], sizes = [32, 16], strides = [1, 1]} : vector<64x16xbf16> to vector<32x16xbf16>
    %c0_3 = arith.constant 0 : index
    %c0_4 = arith.constant 0 : index
    %3 = vector.load %arg1[%c0_3, %c0_4] : memref<32x4xf32, #tpu.memory_space<vmem>>, vector<32x4xf32>
    %c0_5 = arith.constant 0 : index
    %c0_6 = arith.constant 0 : index
    %4 = vector.load %arg5[%c0_5, %c0_6] : memref<4x64xf32, #tpu.memory_space<vmem>>, vector<4x64xf32>
    %cst = arith.constant dense<0.000000e+00> : vector<32x64xf32>
    %5 = tpu.matmul %3, %4, %cst {dimension_numbers = #tpu.dot_dimension_numbers<[1], [0], [0], [1], [0, 0, 1, 1], [], []>} : vector<32x4xf32>, vector<4x64xf32>, vector<32x64xf32> -> vector<32x64xf32>
    %c0_7 = arith.constant 0 : index
    %c0_8 = arith.constant 0 : index
    %6 = vector.load %arg6[%c0_7, %c0_8] : memref<1x64xf32, #tpu.memory_space<vmem>>, vector<1x64xf32>
    %7 = vector.broadcast %6 : vector<1x64xf32> to vector<32x64xf32>
    %8 = arith.addf %5, %7 : vector<32x64xf32>
    %9 = arith.truncf %0 : vector<16x8xf32> to vector<16x8xbf16>
    %cst_9 = arith.constant dense<0.000000e+00> : vector<64x8xf32>
    %10 = tpu.matmul %1, %9, %cst_9 {dimension_numbers = #tpu.dot_dimension_numbers<[1], [0], [0], [1], [0, 0, 1, 1], [], []>} : vector<64x16xbf16>, vector<16x8xbf16>, vector<64x8xf32> -> vector<64x8xf32>
    %11 = vector.extract_strided_slice %10 {offsets = [0, 0], sizes = [32, 8], strides = [1, 1]} : vector<64x8xf32> to vector<32x8xf32>
    %12 = vector.extract_strided_slice %10 {offsets = [32, 0], sizes = [32, 8], strides = [1, 1]} : vector<64x8xf32> to vector<32x8xf32>
    %c0_10 = arith.constant 0 : index
    %c0_11 = arith.constant 0 : index
    %c0_12 = arith.constant 0 : index
    %13 = vector.load %arg4[%c0_10, %c0_11, %c0_12] : memref<4x16x16xf32, #tpu.memory_space<vmem>>, vector<1x16x16xf32>
    %14 = vector.shape_cast %13 : vector<1x16x16xf32> to vector<16x16xf32>
    %15 = vector.extract_strided_slice %14 {offsets = [0, 0], sizes = [8, 16], strides = [1, 1]} : vector<16x16xf32> to vector<8x16xf32>
    %cst_13 = arith.constant dense<0.000000e+00> : vector<32x16xf32>
    %16 = tpu.matmul %11, %15, %cst_13 {dimension_numbers = #tpu.dot_dimension_numbers<[1], [0], [0], [1], [0, 0, 1, 1], [], []>} : vector<32x8xf32>, vector<8x16xf32>, vector<32x16xf32> -> vector<32x16xf32>
    %17 = vector.extract_strided_slice %14 {offsets = [8, 0], sizes = [8, 16], strides = [1, 1]} : vector<16x16xf32> to vector<8x16xf32>
    %cst_14 = arith.constant dense<0.000000e+00> : vector<32x16xf32>
    %18 = tpu.matmul %12, %17, %cst_14 {dimension_numbers = #tpu.dot_dimension_numbers<[1], [0], [0], [1], [0, 0, 1, 1], [], []>} : vector<32x8xf32>, vector<8x16xf32>, vector<32x16xf32> -> vector<32x16xf32>
    %19 = arith.addf %16, %18 : vector<32x16xf32>
    %20 = vector.extract_strided_slice %8 {offsets = [0, 0], sizes = [32, 16], strides = [1, 1]} : vector<32x64xf32> to vector<32x16xf32>
    %21 = arith.addf %19, %20 : vector<32x16xf32>
    %22 = vector.extract_strided_slice %21 {offsets = [0, 0], sizes = [32, 8], strides = [1, 1]} : vector<32x16xf32> to vector<32x8xf32>
    %23 = arith.negf %22 : vector<32x8xf32>
    %24 = math.exp %23 : vector<32x8xf32>
    %cst_15 = arith.constant 1.000000e+00 : f32
    %25 = vector.broadcast %cst_15 : f32 to vector<32x8xf32>
    %26 = arith.addf %25, %24 : vector<32x8xf32>
    %27 = arith.divf %25, %26 : vector<32x8xf32>
    %28 = vector.extract_strided_slice %21 {offsets = [0, 8], sizes = [32, 8], strides = [1, 1]} : vector<32x16xf32> to vector<32x8xf32>
    %cst_16 = arith.constant 0.000000e+00 : f32
    %29 = vector.broadcast %cst_16 : f32 to vector<32x8xf32>
    %30 = arith.maximumf %28, %29 : vector<32x8xf32>
    %31 = vector.broadcast %cst_16 : f32 to vector<32x8xf32>
    %32 = arith.subf %28, %31 : vector<32x8xf32>
    %33 = arith.cmpf one, %32, %32 : vector<32x8xf32>
    %34 = vector.broadcast %cst_16 : f32 to vector<32x8xf32>
    %35 = arith.addf %28, %34 : vector<32x8xf32>
    %36 = math.absf %32 : vector<32x8xf32>
    %cst_17 = arith.constant 0.000000e+00 : f32
    %37 = vector.broadcast %cst_17 : f32 to vector<32x8xf32>
    %38 = arith.subf %37, %36 : vector<32x8xf32>
    %39 = math.exp %38 : vector<32x8xf32>
    %40 = math.log1p %39 : vector<32x8xf32>
    %41 = arith.addf %30, %40 : vector<32x8xf32>
    %42 = arith.select %33, %35, %41 : vector<32x8xi1>, vector<32x8xf32>
    %43 = arith.mulf %27, %42 : vector<32x8xf32>
    %44 = arith.truncf %43 : vector<32x8xf32> to vector<32x8xbf16>
    %cst_18 = arith.constant dense<0.000000e+00> : vector<16x8xf32>
    %45 = tpu.matmul %2, %44, %cst_18 {dimension_numbers = #tpu.dot_dimension_numbers<[0], [0], [1], [1], [0, 1, 1, 1], [], []>} : vector<32x16xbf16>, vector<32x8xbf16>, vector<16x8xf32> -> vector<16x8xf32>
    %c0_19 = arith.constant 0 : index
    %c0_20 = arith.constant 0 : index
    %46 = vector.load %arg7[%c0_19, %c0_20] : memref<4x8xf32, #tpu.memory_space<vmem>>, vector<1x8xf32>
    %47 = vector.shape_cast %46 : vector<1x8xf32> to vector<8xf32>
    %48 = vector.shape_cast %47 : vector<8xf32> to vector<1x8xf32>
    %49 = vector.broadcast %48 : vector<1x8xf32> to vector<16x8xf32>
    %50 = arith.mulf %45, %49 : vector<16x8xf32>
    %51 = arith.addf %0, %50 : vector<16x8xf32>
    %c0_21 = arith.constant 0 : index
    %c0_22 = arith.constant 0 : index
    %52 = vector.load %arg8[%c0_21, %c0_22] : memref<4x8xf32, #tpu.memory_space<vmem>>, vector<1x8xf32>
    %53 = vector.shape_cast %52 : vector<1x8xf32> to vector<8xf32>
    %54 = vector.shape_cast %53 : vector<8xf32> to vector<1x8xf32>
    %55 = vector.broadcast %54 : vector<1x8xf32> to vector<16x8xf32>
    %56 = arith.addf %51, %55 : vector<16x8xf32>
    %57 = arith.truncf %56 : vector<16x8xf32> to vector<16x8xbf16>
    %cst_23 = arith.constant dense<0.000000e+00> : vector<64x8xf32>
    %58 = tpu.matmul %1, %57, %cst_23 {dimension_numbers = #tpu.dot_dimension_numbers<[1], [0], [0], [1], [0, 0, 1, 1], [], []>} : vector<64x16xbf16>, vector<16x8xbf16>, vector<64x8xf32> -> vector<64x8xf32>
    %59 = vector.extract_strided_slice %58 {offsets = [0, 0], sizes = [32, 8], strides = [1, 1]} : vector<64x8xf32> to vector<32x8xf32>
    %60 = vector.extract_strided_slice %58 {offsets = [32, 0], sizes = [32, 8], strides = [1, 1]} : vector<64x8xf32> to vector<32x8xf32>
    %c1 = arith.constant 1 : index
    %c0_24 = arith.constant 0 : index
    %c0_25 = arith.constant 0 : index
    %61 = vector.load %arg4[%c1, %c0_24, %c0_25] : memref<4x16x16xf32, #tpu.memory_space<vmem>>, vector<1x16x16xf32>
    %62 = vector.shape_cast %61 : vector<1x16x16xf32> to vector<16x16xf32>
    %63 = vector.extract_strided_slice %62 {offsets = [0, 0], sizes = [8, 16], strides = [1, 1]} : vector<16x16xf32> to vector<8x16xf32>
    %cst_26 = arith.constant dense<0.000000e+00> : vector<32x16xf32>
    %64 = tpu.matmul %59, %63, %cst_26 {dimension_numbers = #tpu.dot_dimension_numbers<[1], [0], [0], [1], [0, 0, 1, 1], [], []>} : vector<32x8xf32>, vector<8x16xf32>, vector<32x16xf32> -> vector<32x16xf32>
    %65 = vector.extract_strided_slice %62 {offsets = [8, 0], sizes = [8, 16], strides = [1, 1]} : vector<16x16xf32> to vector<8x16xf32>
    %cst_27 = arith.constant dense<0.000000e+00> : vector<32x16xf32>
    %66 = tpu.matmul %60, %65, %cst_27 {dimension_numbers = #tpu.dot_dimension_numbers<[1], [0], [0], [1], [0, 0, 1, 1], [], []>} : vector<32x8xf32>, vector<8x16xf32>, vector<32x16xf32> -> vector<32x16xf32>
    %67 = arith.addf %64, %66 : vector<32x16xf32>
    %68 = vector.extract_strided_slice %8 {offsets = [0, 16], sizes = [32, 16], strides = [1, 1]} : vector<32x64xf32> to vector<32x16xf32>
    %69 = arith.addf %67, %68 : vector<32x16xf32>
    %70 = vector.extract_strided_slice %69 {offsets = [0, 0], sizes = [32, 8], strides = [1, 1]} : vector<32x16xf32> to vector<32x8xf32>
    %71 = arith.negf %70 : vector<32x8xf32>
    %72 = math.exp %71 : vector<32x8xf32>
    %cst_28 = arith.constant 1.000000e+00 : f32
    %73 = vector.broadcast %cst_28 : f32 to vector<32x8xf32>
    %74 = arith.addf %73, %72 : vector<32x8xf32>
    %75 = arith.divf %73, %74 : vector<32x8xf32>
    %76 = vector.extract_strided_slice %69 {offsets = [0, 8], sizes = [32, 8], strides = [1, 1]} : vector<32x16xf32> to vector<32x8xf32>
    %cst_29 = arith.constant 0.000000e+00 : f32
    %77 = vector.broadcast %cst_29 : f32 to vector<32x8xf32>
    %78 = arith.maximumf %76, %77 : vector<32x8xf32>
    %79 = vector.broadcast %cst_29 : f32 to vector<32x8xf32>
    %80 = arith.subf %76, %79 : vector<32x8xf32>
    %81 = arith.cmpf one, %80, %80 : vector<32x8xf32>
    %82 = vector.broadcast %cst_29 : f32 to vector<32x8xf32>
    %83 = arith.addf %76, %82 : vector<32x8xf32>
    %84 = math.absf %80 : vector<32x8xf32>
    %cst_30 = arith.constant 0.000000e+00 : f32
    %85 = vector.broadcast %cst_30 : f32 to vector<32x8xf32>
    %86 = arith.subf %85, %84 : vector<32x8xf32>
    %87 = math.exp %86 : vector<32x8xf32>
    %88 = math.log1p %87 : vector<32x8xf32>
    %89 = arith.addf %78, %88 : vector<32x8xf32>
    %90 = arith.select %81, %83, %89 : vector<32x8xi1>, vector<32x8xf32>
    %91 = arith.mulf %75, %90 : vector<32x8xf32>
    %92 = arith.truncf %91 : vector<32x8xf32> to vector<32x8xbf16>
    %cst_31 = arith.constant dense<0.000000e+00> : vector<16x8xf32>
    %93 = tpu.matmul %2, %92, %cst_31 {dimension_numbers = #tpu.dot_dimension_numbers<[0], [0], [1], [1], [0, 1, 1, 1], [], []>} : vector<32x16xbf16>, vector<32x8xbf16>, vector<16x8xf32> -> vector<16x8xf32>
    %c1_32 = arith.constant 1 : index
    %c0_33 = arith.constant 0 : index
    %94 = vector.load %arg7[%c1_32, %c0_33] : memref<4x8xf32, #tpu.memory_space<vmem>>, vector<1x8xf32>
    %95 = vector.shape_cast %94 : vector<1x8xf32> to vector<8xf32>
    %96 = vector.shape_cast %95 : vector<8xf32> to vector<1x8xf32>
    %97 = vector.broadcast %96 : vector<1x8xf32> to vector<16x8xf32>
    %98 = arith.mulf %93, %97 : vector<16x8xf32>
    %99 = arith.addf %56, %98 : vector<16x8xf32>
    %c1_34 = arith.constant 1 : index
    %c0_35 = arith.constant 0 : index
    %100 = vector.load %arg8[%c1_34, %c0_35] : memref<4x8xf32, #tpu.memory_space<vmem>>, vector<1x8xf32>
    %101 = vector.shape_cast %100 : vector<1x8xf32> to vector<8xf32>
    %102 = vector.shape_cast %101 : vector<8xf32> to vector<1x8xf32>
    %103 = vector.broadcast %102 : vector<1x8xf32> to vector<16x8xf32>
    %104 = arith.addf %99, %103 : vector<16x8xf32>
    %105 = arith.truncf %104 : vector<16x8xf32> to vector<16x8xbf16>
    %cst_36 = arith.constant dense<0.000000e+00> : vector<64x8xf32>
    %106 = tpu.matmul %1, %105, %cst_36 {dimension_numbers = #tpu.dot_dimension_numbers<[1], [0], [0], [1], [0, 0, 1, 1], [], []>} : vector<64x16xbf16>, vector<16x8xbf16>, vector<64x8xf32> -> vector<64x8xf32>
    %107 = vector.extract_strided_slice %106 {offsets = [0, 0], sizes = [32, 8], strides = [1, 1]} : vector<64x8xf32> to vector<32x8xf32>
    %108 = vector.extract_strided_slice %106 {offsets = [32, 0], sizes = [32, 8], strides = [1, 1]} : vector<64x8xf32> to vector<32x8xf32>
    %c2 = arith.constant 2 : index
    %c0_37 = arith.constant 0 : index
    %c0_38 = arith.constant 0 : index
    %109 = vector.load %arg4[%c2, %c0_37, %c0_38] : memref<4x16x16xf32, #tpu.memory_space<vmem>>, vector<1x16x16xf32>
    %110 = vector.shape_cast %109 : vector<1x16x16xf32> to vector<16x16xf32>
    %111 = vector.extract_strided_slice %110 {offsets = [0, 0], sizes = [8, 16], strides = [1, 1]} : vector<16x16xf32> to vector<8x16xf32>
    %cst_39 = arith.constant dense<0.000000e+00> : vector<32x16xf32>
    %112 = tpu.matmul %107, %111, %cst_39 {dimension_numbers = #tpu.dot_dimension_numbers<[1], [0], [0], [1], [0, 0, 1, 1], [], []>} : vector<32x8xf32>, vector<8x16xf32>, vector<32x16xf32> -> vector<32x16xf32>
    %113 = vector.extract_strided_slice %110 {offsets = [8, 0], sizes = [8, 16], strides = [1, 1]} : vector<16x16xf32> to vector<8x16xf32>
    %cst_40 = arith.constant dense<0.000000e+00> : vector<32x16xf32>
    %114 = tpu.matmul %108, %113, %cst_40 {dimension_numbers = #tpu.dot_dimension_numbers<[1], [0], [0], [1], [0, 0, 1, 1], [], []>} : vector<32x8xf32>, vector<8x16xf32>, vector<32x16xf32> -> vector<32x16xf32>
    %115 = arith.addf %112, %114 : vector<32x16xf32>
    %116 = vector.extract_strided_slice %8 {offsets = [0, 32], sizes = [32, 16], strides = [1, 1]} : vector<32x64xf32> to vector<32x16xf32>
    %117 = arith.addf %115, %116 : vector<32x16xf32>
    %118 = vector.extract_strided_slice %117 {offsets = [0, 0], sizes = [32, 8], strides = [1, 1]} : vector<32x16xf32> to vector<32x8xf32>
    %119 = arith.negf %118 : vector<32x8xf32>
    %120 = math.exp %119 : vector<32x8xf32>
    %cst_41 = arith.constant 1.000000e+00 : f32
    %121 = vector.broadcast %cst_41 : f32 to vector<32x8xf32>
    %122 = arith.addf %121, %120 : vector<32x8xf32>
    %123 = arith.divf %121, %122 : vector<32x8xf32>
    %124 = vector.extract_strided_slice %117 {offsets = [0, 8], sizes = [32, 8], strides = [1, 1]} : vector<32x16xf32> to vector<32x8xf32>
    %cst_42 = arith.constant 0.000000e+00 : f32
    %125 = vector.broadcast %cst_42 : f32 to vector<32x8xf32>
    %126 = arith.maximumf %124, %125 : vector<32x8xf32>
    %127 = vector.broadcast %cst_42 : f32 to vector<32x8xf32>
    %128 = arith.subf %124, %127 : vector<32x8xf32>
    %129 = arith.cmpf one, %128, %128 : vector<32x8xf32>
    %130 = vector.broadcast %cst_42 : f32 to vector<32x8xf32>
    %131 = arith.addf %124, %130 : vector<32x8xf32>
    %132 = math.absf %128 : vector<32x8xf32>
    %cst_43 = arith.constant 0.000000e+00 : f32
    %133 = vector.broadcast %cst_43 : f32 to vector<32x8xf32>
    %134 = arith.subf %133, %132 : vector<32x8xf32>
    %135 = math.exp %134 : vector<32x8xf32>
    %136 = math.log1p %135 : vector<32x8xf32>
    %137 = arith.addf %126, %136 : vector<32x8xf32>
    %138 = arith.select %129, %131, %137 : vector<32x8xi1>, vector<32x8xf32>
    %139 = arith.mulf %123, %138 : vector<32x8xf32>
    %140 = arith.truncf %139 : vector<32x8xf32> to vector<32x8xbf16>
    %cst_44 = arith.constant dense<0.000000e+00> : vector<16x8xf32>
    %141 = tpu.matmul %2, %140, %cst_44 {dimension_numbers = #tpu.dot_dimension_numbers<[0], [0], [1], [1], [0, 1, 1, 1], [], []>} : vector<32x16xbf16>, vector<32x8xbf16>, vector<16x8xf32> -> vector<16x8xf32>
    %c2_45 = arith.constant 2 : index
    %c0_46 = arith.constant 0 : index
    %142 = vector.load %arg7[%c2_45, %c0_46] : memref<4x8xf32, #tpu.memory_space<vmem>>, vector<1x8xf32>
    %143 = vector.shape_cast %142 : vector<1x8xf32> to vector<8xf32>
    %144 = vector.shape_cast %143 : vector<8xf32> to vector<1x8xf32>
    %145 = vector.broadcast %144 : vector<1x8xf32> to vector<16x8xf32>
    %146 = arith.mulf %141, %145 : vector<16x8xf32>
    %147 = arith.addf %104, %146 : vector<16x8xf32>
    %c2_47 = arith.constant 2 : index
    %c0_48 = arith.constant 0 : index
    %148 = vector.load %arg8[%c2_47, %c0_48] : memref<4x8xf32, #tpu.memory_space<vmem>>, vector<1x8xf32>
    %149 = vector.shape_cast %148 : vector<1x8xf32> to vector<8xf32>
    %150 = vector.shape_cast %149 : vector<8xf32> to vector<1x8xf32>
    %151 = vector.broadcast %150 : vector<1x8xf32> to vector<16x8xf32>
    %152 = arith.addf %147, %151 : vector<16x8xf32>
    %153 = arith.truncf %152 : vector<16x8xf32> to vector<16x8xbf16>
    %cst_49 = arith.constant dense<0.000000e+00> : vector<64x8xf32>
    %154 = tpu.matmul %1, %153, %cst_49 {dimension_numbers = #tpu.dot_dimension_numbers<[1], [0], [0], [1], [0, 0, 1, 1], [], []>} : vector<64x16xbf16>, vector<16x8xbf16>, vector<64x8xf32> -> vector<64x8xf32>
    %155 = vector.extract_strided_slice %154 {offsets = [0, 0], sizes = [32, 8], strides = [1, 1]} : vector<64x8xf32> to vector<32x8xf32>
    %156 = vector.extract_strided_slice %154 {offsets = [32, 0], sizes = [32, 8], strides = [1, 1]} : vector<64x8xf32> to vector<32x8xf32>
    %c3 = arith.constant 3 : index
    %c0_50 = arith.constant 0 : index
    %c0_51 = arith.constant 0 : index
    %157 = vector.load %arg4[%c3, %c0_50, %c0_51] : memref<4x16x16xf32, #tpu.memory_space<vmem>>, vector<1x16x16xf32>
    %158 = vector.shape_cast %157 : vector<1x16x16xf32> to vector<16x16xf32>
    %159 = vector.extract_strided_slice %158 {offsets = [0, 0], sizes = [8, 16], strides = [1, 1]} : vector<16x16xf32> to vector<8x16xf32>
    %cst_52 = arith.constant dense<0.000000e+00> : vector<32x16xf32>
    %160 = tpu.matmul %155, %159, %cst_52 {dimension_numbers = #tpu.dot_dimension_numbers<[1], [0], [0], [1], [0, 0, 1, 1], [], []>} : vector<32x8xf32>, vector<8x16xf32>, vector<32x16xf32> -> vector<32x16xf32>
    %161 = vector.extract_strided_slice %158 {offsets = [8, 0], sizes = [8, 16], strides = [1, 1]} : vector<16x16xf32> to vector<8x16xf32>
    %cst_53 = arith.constant dense<0.000000e+00> : vector<32x16xf32>
    %162 = tpu.matmul %156, %161, %cst_53 {dimension_numbers = #tpu.dot_dimension_numbers<[1], [0], [0], [1], [0, 0, 1, 1], [], []>} : vector<32x8xf32>, vector<8x16xf32>, vector<32x16xf32> -> vector<32x16xf32>
    %163 = arith.addf %160, %162 : vector<32x16xf32>
    %164 = vector.extract_strided_slice %8 {offsets = [0, 48], sizes = [32, 16], strides = [1, 1]} : vector<32x64xf32> to vector<32x16xf32>
    %165 = arith.addf %163, %164 : vector<32x16xf32>
    %166 = vector.extract_strided_slice %165 {offsets = [0, 0], sizes = [32, 8], strides = [1, 1]} : vector<32x16xf32> to vector<32x8xf32>
    %167 = arith.negf %166 : vector<32x8xf32>
    %168 = math.exp %167 : vector<32x8xf32>
    %cst_54 = arith.constant 1.000000e+00 : f32
    %169 = vector.broadcast %cst_54 : f32 to vector<32x8xf32>
    %170 = arith.addf %169, %168 : vector<32x8xf32>
    %171 = arith.divf %169, %170 : vector<32x8xf32>
    %172 = vector.extract_strided_slice %165 {offsets = [0, 8], sizes = [32, 8], strides = [1, 1]} : vector<32x16xf32> to vector<32x8xf32>
    %cst_55 = arith.constant 0.000000e+00 : f32
    %173 = vector.broadcast %cst_55 : f32 to vector<32x8xf32>
    %174 = arith.maximumf %172, %173 : vector<32x8xf32>
    %175 = vector.broadcast %cst_55 : f32 to vector<32x8xf32>
    %176 = arith.subf %172, %175 : vector<32x8xf32>
    %177 = arith.cmpf one, %176, %176 : vector<32x8xf32>
    %178 = vector.broadcast %cst_55 : f32 to vector<32x8xf32>
    %179 = arith.addf %172, %178 : vector<32x8xf32>
    %180 = math.absf %176 : vector<32x8xf32>
    %cst_56 = arith.constant 0.000000e+00 : f32
    %181 = vector.broadcast %cst_56 : f32 to vector<32x8xf32>
    %182 = arith.subf %181, %180 : vector<32x8xf32>
    %183 = math.exp %182 : vector<32x8xf32>
    %184 = math.log1p %183 : vector<32x8xf32>
    %185 = arith.addf %174, %184 : vector<32x8xf32>
    %186 = arith.select %177, %179, %185 : vector<32x8xi1>, vector<32x8xf32>
    %187 = arith.mulf %171, %186 : vector<32x8xf32>
    %188 = arith.truncf %187 : vector<32x8xf32> to vector<32x8xbf16>
    %cst_57 = arith.constant dense<0.000000e+00> : vector<16x8xf32>
    %189 = tpu.matmul %2, %188, %cst_57 {dimension_numbers = #tpu.dot_dimension_numbers<[0], [0], [1], [1], [0, 1, 1, 1], [], []>} : vector<32x16xbf16>, vector<32x8xbf16>, vector<16x8xf32> -> vector<16x8xf32>
    %c3_58 = arith.constant 3 : index
    %c0_59 = arith.constant 0 : index
    %190 = vector.load %arg7[%c3_58, %c0_59] : memref<4x8xf32, #tpu.memory_space<vmem>>, vector<1x8xf32>
    %191 = vector.shape_cast %190 : vector<1x8xf32> to vector<8xf32>
    %192 = vector.shape_cast %191 : vector<8xf32> to vector<1x8xf32>
    %193 = vector.broadcast %192 : vector<1x8xf32> to vector<16x8xf32>
    %194 = arith.mulf %189, %193 : vector<16x8xf32>
    %195 = arith.addf %152, %194 : vector<16x8xf32>
    %c3_60 = arith.constant 3 : index
    %c0_61 = arith.constant 0 : index
    %196 = vector.load %arg8[%c3_60, %c0_61] : memref<4x8xf32, #tpu.memory_space<vmem>>, vector<1x8xf32>
    %197 = vector.shape_cast %196 : vector<1x8xf32> to vector<8xf32>
    %198 = vector.shape_cast %197 : vector<8xf32> to vector<1x8xf32>
    %199 = vector.broadcast %198 : vector<1x8xf32> to vector<16x8xf32>
    %200 = arith.addf %195, %199 : vector<16x8xf32>
    %c0_62 = arith.constant 0 : index
    %c0_63 = arith.constant 0 : index
    %201 = vector.load %arg3[%c0_62, %c0_63] : memref<2x16xf32, #tpu.memory_space<vmem>>, vector<2x16xf32>
    %cst_64 = arith.constant dense<0.000000e+00> : vector<2x8xf32>
    %202 = tpu.matmul %201, %200, %cst_64 {dimension_numbers = #tpu.dot_dimension_numbers<[1], [0], [0], [1], [0, 0, 1, 1], [], []>} : vector<2x16xf32>, vector<16x8xf32>, vector<2x8xf32> -> vector<2x8xf32>
    %c0_65 = arith.constant 0 : index
    %c0_66 = arith.constant 0 : index
    %203 = vector.load %arg9[%c0_65, %c0_66] : memref<8x32xf32, #tpu.memory_space<vmem>>, vector<8x32xf32>
    %cst_67 = arith.constant dense<0.000000e+00> : vector<2x32xf32>
    %204 = tpu.matmul %202, %203, %cst_67 {dimension_numbers = #tpu.dot_dimension_numbers<[1], [0], [0], [1], [0, 0, 1, 1], [], []>} : vector<2x8xf32>, vector<8x32xf32>, vector<2x32xf32> -> vector<2x32xf32>
    %c0_68 = arith.constant 0 : index
    %c0_69 = arith.constant 0 : index
    %205 = vector.load %arg10[%c0_68, %c0_69] : memref<1x32xf32, #tpu.memory_space<vmem>>, vector<1x32xf32>
    %206 = vector.broadcast %205 : vector<1x32xf32> to vector<2x32xf32>
    %207 = arith.addf %204, %206 : vector<2x32xf32>
    %cst_70 = arith.constant 0.000000e+00 : f32
    %208 = vector.broadcast %cst_70 : f32 to vector<2x32xf32>
    %209 = arith.maximumf %207, %208 : vector<2x32xf32>
    %c0_71 = arith.constant 0 : index
    %c0_72 = arith.constant 0 : index
    %210 = vector.load %arg11[%c0_71, %c0_72] : memref<32x16xf32, #tpu.memory_space<vmem>>, vector<32x16xf32>
    %cst_73 = arith.constant dense<0.000000e+00> : vector<2x16xf32>
    %211 = tpu.matmul %209, %210, %cst_73 {dimension_numbers = #tpu.dot_dimension_numbers<[1], [0], [0], [1], [0, 0, 1, 1], [], []>} : vector<2x32xf32>, vector<32x16xf32>, vector<2x16xf32> -> vector<2x16xf32>
    %c0_74 = arith.constant 0 : index
    %c0_75 = arith.constant 0 : index
    %212 = vector.load %arg12[%c0_74, %c0_75] : memref<1x16xf32, #tpu.memory_space<vmem>>, vector<1x16xf32>
    %213 = vector.broadcast %212 : vector<1x16xf32> to vector<2x16xf32>
    %214 = arith.addf %211, %213 : vector<2x16xf32>
    %cst_76 = arith.constant 0.000000e+00 : f32
    %215 = vector.broadcast %cst_76 : f32 to vector<2x16xf32>
    %216 = arith.maximumf %214, %215 : vector<2x16xf32>
    %c0_77 = arith.constant 0 : index
    %c0_78 = arith.constant 0 : index
    %217 = vector.load %arg13[%c0_77, %c0_78] : memref<16x4xf32, #tpu.memory_space<vmem>>, vector<16x4xf32>
    %cst_79 = arith.constant dense<0.000000e+00> : vector<2x4xf32>
    %218 = tpu.matmul %216, %217, %cst_79 {dimension_numbers = #tpu.dot_dimension_numbers<[1], [0], [0], [1], [0, 0, 1, 1], [], []>} : vector<2x16xf32>, vector<16x4xf32>, vector<2x4xf32> -> vector<2x4xf32>
    %c0_80 = arith.constant 0 : index
    %c0_81 = arith.constant 0 : index
    %219 = vector.load %arg14[%c0_80, %c0_81] : memref<1x4xf32, #tpu.memory_space<vmem>>, vector<1x4xf32>
    %220 = vector.broadcast %219 : vector<1x4xf32> to vector<2x4xf32>
    %221 = arith.addf %218, %220 : vector<2x4xf32>
    %c0_82 = arith.constant 0 : index
    %c0_83 = arith.constant 0 : index
    %222 = vector.load %arg15[%c0_82, %c0_83] : memref<2x4xf32, #tpu.memory_space<vmem>>, vector<2x4xf32>
    tpu.vector_store %arg15[%c0_82, %c0_83], %221 {strides = array<i32>} : memref<2x4xf32, #tpu.memory_space<vmem>>, vector<2x4xf32>,
    return
  }
}

</mosaic_0001>

<llo_original>
// kernel: tpu_custom_call.1
$region0: #{tpu_custom_call.1}
  #allocation0 [shape = 'u32[]', space=smem, size = 0x4, offset = 0x4, fixed_abs, tag = 'smem constant byte address 0x4 - core index']
  #allocation1 [shape = 'u32[144,128]{1,0:T(1,128)}', space=vmem, size = 0x12000, scoped, tag = 'internal scratch']
  %s0 = inlined_call_operand.vmem [shape: f32[16,8], index: 0, kind: input, shape index: {}]
  %s1 = inlined_call_operand.vmem [shape: f32[32,4], index: 1, kind: input, shape index: {}]
  %s2 = inlined_call_operand.vmem [shape: bf16[64,16], index: 2, kind: input, shape index: {}]
  %s3 = inlined_call_operand.vmem [shape: f32[2,16], index: 3, kind: input, shape index: {}]
  %s4 = inlined_call_operand.vmem [shape: f32[4,16,16], index: 4, kind: input, shape index: {}]
  %s5 = inlined_call_operand.vmem [shape: f32[4,64], index: 5, kind: input, shape index: {}]
  %s6 = inlined_call_operand.vmem [shape: f32[1,64], index: 6, kind: input, shape index: {}]
  %s7 = inlined_call_operand.vmem [shape: f32[4,8], index: 7, kind: input, shape index: {}]
  %s8 = inlined_call_operand.vmem [shape: f32[4,8], index: 8, kind: input, shape index: {}]
  %s9 = inlined_call_operand.vmem [shape: f32[8,32], index: 9, kind: input, shape index: {}]
  %s10 = inlined_call_operand.vmem [shape: f32[1,32], index: 10, kind: input, shape index: {}]
  %s11 = inlined_call_operand.vmem [shape: f32[32,16], index: 11, kind: input, shape index: {}]
  %s12 = inlined_call_operand.vmem [shape: f32[1,16], index: 12, kind: input, shape index: {}]
  %s13 = inlined_call_operand.vmem [shape: f32[16,4], index: 13, kind: input, shape index: {}]
  %s14 = inlined_call_operand.vmem [shape: f32[1,4], index: 14, kind: input, shape index: {}]
  %s15 = inlined_call_operand.hbm [shape: f32[2,4], index: 15, kind: output, shape index: {}]
  %s16 = sld [smem:[#allocation0]]
  $region70: #{tpu_custom_call.1} parent=0
    _
  %s18 = ssub.s32 1, %s16
  %s19 = scalar_select 0, %s18, %s16
  $region1: #{tpu_custom_call.1} parent=0
    #allocation2 [shape = 'u8[1024]{0}', space=vmem, size = 0x400, scoped, tag = 'output window, operand 0, single buffered']
    #allocation3 [shape = 's32[1]{0}', space=sflag, size = 0x4, scoped, tag = 'scoped memory for tpu_custom_call.1']
    %20 = vsyncpa [#allocation3], 0
    // Predicated region
    $region2: #{tpu_custom_call.1} parent=1 // pred_check
      _
    $region3: #{tpu_custom_call.1} parent=1 // pred_check_branch
      %22 = sbr.rel (0) target = $region5
    $region4: #{tpu_custom_call.1} parent=1 // pred_region
      _
    $region5: #{tpu_custom_call.1} parent=1 // pred_fallthru
      _
    // Predicated region
    $region6: #{tpu_custom_call.1} parent=1 // pred_check
      _
    $region7: #{tpu_custom_call.1} parent=1 // pred_check_branch
      %24 = sbr.rel (0) target = $region9
    $region8: #{tpu_custom_call.1} parent=1 // pred_region
      _
    $region9: #{tpu_custom_call.1} parent=1 // pred_fallthru
      _
    // Predicated region
    $region10: #{tpu_custom_call.1} parent=1 // pred_check
      _
    $region11: #{tpu_custom_call.1} parent=1 // pred_check_branch
      %26 = sbr.rel (0) target = $region13
    $region12: #{tpu_custom_call.1} parent=1 // pred_region
      _
    $region13: #{tpu_custom_call.1} parent=1 // pred_fallthru
      _
    // Predicated region
    $region14: #{tpu_custom_call.1} parent=1 // pred_check
      _
    $region15: #{tpu_custom_call.1} parent=1 // pred_check_branch
      %28 = sbr.rel (0) target = $region17
    $region16: #{tpu_custom_call.1} parent=1 // pred_region
      _
    $region17: #{tpu_custom_call.1} parent=1 // pred_fallthru
      _
    // Predicated region
    $region18: #{tpu_custom_call.1} parent=1 // pred_check
      _
    $region19: #{tpu_custom_call.1} parent=1 // pred_check_branch
      %30 = sbr.rel (0) target = $region21
    $region20: #{tpu_custom_call.1} parent=1 // pred_region
      _
    $region21: #{tpu_custom_call.1} parent=1 // pred_fallthru
      _
    // Predicated region
    $region22: #{tpu_custom_call.1} parent=1 // pred_check
      _
    $region23: #{tpu_custom_call.1} parent=1 // pred_check_branch
      %32 = sbr.rel (0) target = $region25
    $region24: #{tpu_custom_call.1} parent=1 // pred_region
      _
    $region25: #{tpu_custom_call.1} parent=1 // pred_fallthru
      _
    // Predicated region
    $region26: #{tpu_custom_call.1} parent=1 // pred_check
      _
    $region27: #{tpu_custom_call.1} parent=1 // pred_check_branch
      %34 = sbr.rel (0) target = $region29
    $region28: #{tpu_custom_call.1} parent=1 // pred_region
      _
    $region29: #{tpu_custom_call.1} parent=1 // pred_fallthru
      _
    // Predicated region
    $region30: #{tpu_custom_call.1} parent=1 // pred_check
      _
    $region31: #{tpu_custom_call.1} parent=1 // pred_check_branch
      %36 = sbr.rel (0) target = $region33
    $region32: #{tpu_custom_call.1} parent=1 // pred_region
      _
    $region33: #{tpu_custom_call.1} parent=1 // pred_fallthru
      _
    // Predicated region
    $region34: #{tpu_custom_call.1} parent=1 // pred_check
      _
    $region35: #{tpu_custom_call.1} parent=1 // pred_check_branch
      %38 = sbr.rel (0) target = $region37
    $region36: #{tpu_custom_call.1} parent=1 // pred_region
      _
    $region37: #{tpu_custom_call.1} parent=1 // pred_fallthru
      _
    // Predicated region
    $region38: #{tpu_custom_call.1} parent=1 // pred_check
      _
    $region39: #{tpu_custom_call.1} parent=1 // pred_check_branch
      %40 = sbr.rel (0) target = $region41
    $region40: #{tpu_custom_call.1} parent=1 // pred_region
      _
    $region41: #{tpu_custom_call.1} parent=1 // pred_fallthru
      _
    // Predicated region
    $region42: #{tpu_custom_call.1} parent=1 // pred_check
      _
    $region43: #{tpu_custom_call.1} parent=1 // pred_check_branch
      %42 = sbr.rel (0) target = $region45
    $region44: #{tpu_custom_call.1} parent=1 // pred_region
      _
    $region45: #{tpu_custom_call.1} parent=1 // pred_fallthru
      _
    // Predicated region
    $region46: #{tpu_custom_call.1} parent=1 // pred_check
      _
    $region47: #{tpu_custom_call.1} parent=1 // pred_check_branch
      %44 = sbr.rel (0) target = $region49
    $region48: #{tpu_custom_call.1} parent=1 // pred_region
      _
    $region49: #{tpu_custom_call.1} parent=1 // pred_fallthru
      _
    // Predicated region
    $region50: #{tpu_custom_call.1} parent=1 // pred_check
      _
    $region51: #{tpu_custom_call.1} parent=1 // pred_check_branch
      %46 = sbr.rel (0) target = $region53
    $region52: #{tpu_custom_call.1} parent=1 // pred_region
      _
    $region53: #{tpu_custom_call.1} parent=1 // pred_fallthru
      _
    // Predicated region
    $region54: #{tpu_custom_call.1} parent=1 // pred_check
      _
    $region55: #{tpu_custom_call.1} parent=1 // pred_check_branch
      %48 = sbr.rel (0) target = $region57
    $region56: #{tpu_custom_call.1} parent=1 // pred_region
      _
    $region57: #{tpu_custom_call.1} parent=1 // pred_fallthru
      _
    // Predicated region
    $region58: #{tpu_custom_call.1} parent=1 // pred_check
      _
    $region59: #{tpu_custom_call.1} parent=1 // pred_check_branch
      %50 = sbr.rel (0) target = $region61
    $region60: #{tpu_custom_call.1} parent=1 // pred_region
      _
    $region61: #{tpu_custom_call.1} parent=1 // pred_fallthru
      _
    %v52 = vld [vmem:[%s0] sm:$0xff]
    %v53 = vld [vmem:[%s0 + $0x8] sm:$0xff]
    %v54 = vld [vmem:[%s2] sm:$0xf]
    %v55 = vld [vmem:[%s2 + $0x4] sm:$0xf]
    %v56 = vld [vmem:[%s2 + $0x8] sm:$0xf]
    %v57 = vld [vmem:[%s2 + $0xc] sm:$0xf]
    %v58 = vld [vmem:[%s2 + $0x10] sm:$0xf]
    %v59 = vld [vmem:[%s2 + $0x14] sm:$0xf]
    %v60 = vld [vmem:[%s2 + $0x18] sm:$0xf]
    %v61 = vld [vmem:[%s2 + $0x1c] sm:$0xf]
    %v62 = vld [vmem:[%s1] sm:$0xff]
    %v63 = vld [vmem:[%s1 + $0x8] sm:$0xff]
    %v64 = vld [vmem:[%s1 + $0x10] sm:$0xff]
    %v65 = vld [vmem:[%s1 + $0x18] sm:$0xff]
    %v66 = vld [vmem:[%s5] sm:$0xf]
    %v67 = vld [vmem:[%s6] sm:$0x1]
    %v69 = vlaneseq
    %v70 = vshrl.u32 %v69, 7
    %v71 = vsub.s32 0, %v70
    %v72 = vrot.slane %v67, %v71
    %vm74 = vcmask 31744
    %v76 = vsel %vm74, %v62, 0
    %v79 = vsel %vm74, %v63, 0
    %v82 = vsel %vm74, %v64, 0
    %v85 = vsel %vm74, %v65, 0
    %vm87 = vcmask 1043456
    %v89 = vsel %vm87, %v66, 0
    %91 = vmatprep.subr.mxu0 0.0
    %92 = vmatpush1.msra.mxu0 0.0
    %93 = vmatprep.subr.mxu0 0.0
    %94 = vmatpush1.msra.mxu0 0.0
    %95 = vmatprep.subr.mxu0 0.0
    %96 = vmatpush1.msra.mxu0 0.0
    %97 = vmatprep.subr.mxu0 0.0
    %98 = vmatpush1.msra.mxu0 0.0
    %99 = vmatprep.subr.mxu0 0.0
    %100 = vmatpush1.msra.mxu0 0.0
    %101 = vmatprep.subr.mxu0 0.0
    %102 = vmatpush1.msra.mxu0 0.0
    %103 = vmatprep.subr.mxu0 0.0
    %104 = vmatpush1.msra.mxu0 0.0
    %105 = vmatprep.subr.mxu0 0.0
    %106 = vmatpush1.msra.mxu0 0.0
    %107 = vmatprep.subr.mxu0 0.0
    %108 = vmatpush1.msra.mxu0 0.0
    %109 = vmatprep.subr.mxu0 0.0
    %110 = vmatpush1.msra.mxu0 0.0
    %111 = vmatprep.subr.mxu0 0.0
    %112 = vmatpush1.msra.mxu0 0.0
    %113 = vmatprep.subr.mxu0 0.0
    %114 = vmatpush1.msra.mxu0 0.0
    %115 = vmatprep.subr.mxu0 0.0
    %116 = vmatpush1.msra.mxu0 0.0
    %117 = vmatprep.subr.mxu0 0.0
    %118 = vmatpush1.msra.mxu0 0.0
    %119 = vmatprep.subr.mxu0 0.0
    %120 = vmatpush1.msra.mxu0 0.0
    %121 = vmatprep.subr.mxu0 0.0
    %122 = vmatpush1.msra.mxu0 %v89
    %123 = vmatprep.subr.mxu0 0.0
    %124 = vmatpush2.msra.mxu0 0.0
    %125 = vmatprep.subr.mxu0 0.0
    %126 = vmatpush2.msra.mxu0 0.0
    %127 = vmatprep.subr.mxu0 0.0
    %128 = vmatpush2.msra.mxu0 0.0
    %129 = vmatprep.subr.mxu0 0.0
    %130 = vmatpush2.msra.mxu0 0.0
    %131 = vmatprep.subr.mxu0 0.0
    %132 = vmatpush2.msra.mxu0 0.0
    %133 = vmatprep.subr.mxu0 0.0
    %134 = vmatpush2.msra.mxu0 0.0
    %135 = vmatprep.subr.mxu0 0.0
    %136 = vmatpush2.msra.mxu0 0.0
    %137 = vmatprep.subr.mxu0 0.0
    %138 = vmatpush2.msra.mxu0 0.0
    %139 = vmatprep.subr.mxu0 0.0
    %140 = vmatpush2.msra.mxu0 0.0
    %141 = vmatprep.subr.mxu0 0.0
    %142 = vmatpush2.msra.mxu0 0.0
    %143 = vmatprep.subr.mxu0 0.0
    %144 = vmatpush2.msra.mxu0 0.0
    %145 = vmatprep.subr.mxu0 0.0
    %146 = vmatpush2.msra.mxu0 0.0
    %147 = vmatprep.subr.mxu0 0.0
    %148 = vmatpush2.msra.mxu0 0.0
    %149 = vmatprep.subr.mxu0 0.0
    %150 = vmatpush2.msra.mxu0 0.0
    %151 = vmatprep.subr.mxu0 0.0
    %152 = vmatpush2.msra.mxu0 0.0
    %153 = vmatprep.subr.mxu0 0.0
    %154 = vmatpush2.msra.mxu0 0.0
    %155 = vmatprep.mubr.f32.mxu0 0.0
    %156 = vmatmul.mubr.f32.gmra.mxu0 %v76
    %v157 = vpop.f32.mrf.mxu0
    %v158 = vadd.f32 %v72, %v157
    %v159 = vpop.f32.mrf.mxu0
    %160 = vmatprep.mubr.f32.mxu0 0.0
    %161 = vmatmul.mubr.f32.gmra.mxu0 %v79
    %v162 = vpop.f32.mrf.mxu0
    %v163 = vadd.f32 %v72, %v162
    %v164 = vpop.f32.mrf.mxu0
    %165 = vmatprep.mubr.f32.mxu0 0.0
    %166 = vmatmul.mubr.f32.gmra.mxu0 %v82
    %v167 = vpop.f32.mrf.mxu0
    %v168 = vadd.f32 %v72, %v167
    %v169 = vpop.f32.mrf.mxu0
    %170 = vmatprep.mubr.f32.mxu0 0.0
    %171 = vmatmul.mubr.f32.gmra.mxu0 %v85
    %v172 = vpop.f32.mrf.mxu0
    %v173 = vadd.f32 %v72, %v172
    %v174 = vpop.f32.mrf.mxu0
    %175 = vdwg.mxu0
    %v176 = vpack.c.bf16 %v53, %v52
    %v185 = vunpack.c.l.b16 %v54
    %v186 = vunpack.c.l.b16 %v55
    %v187 = vunpack.c.l.b16 %v56
    %v188 = vunpack.c.l.b16 %v57
    %v189 = vunpack.c.l.b16 %v58
    %v190 = vunpack.c.l.b16 %v59
    %v191 = vunpack.c.l.b16 %v60
    %v192 = vunpack.c.l.b16 %v61
    %v193 = vpack.c.b16 %v186, %v185
    %v194 = vpack.c.b16 %v188, %v187
    %v195 = vpack.c.b16 %v190, %v189
    %v196 = vpack.c.b16 %v192, %v191
    %vm197 = vcmask 130048
    %v199 = vsel %vm197, %v193, 0
    %v202 = vsel %vm197, %v194, 0
    %v205 = vsel %vm197, %v195, 0
    %v208 = vsel %vm197, %v196, 0
    %210 = vmatprep.subr.bf16.mxu0 0
    %211 = vmatpush1.bf16.msra.mxu0 0
    %212 = vmatprep.subr.bf16.mxu0 0
    %213 = vmatpush1.bf16.msra.mxu0 0
    %214 = vmatprep.subr.bf16.mxu0 0
    %215 = vmatpush1.bf16.msra.mxu0 0
    %216 = vmatprep.subr.bf16.mxu0 0
    %217 = vmatpush1.bf16.msra.mxu0 0
    %218 = vmatprep.subr.bf16.mxu0 0
    %219 = vmatpush1.bf16.msra.mxu0 0
    %220 = vmatprep.subr.bf16.mxu0 0
    %221 = vmatpush1.bf16.msra.mxu0 0
    %222 = vmatprep.subr.bf16.mxu0 0
    %223 = vmatpush1.bf16.msra.mxu0 0
    %224 = vmatprep.subr.bf16.mxu0 0
    %225 = vmatpush1.bf16.msra.mxu0 %v176
    %226 = vmatprep.subr.bf16.mxu0 0
    %227 = vmatpush2.bf16.msra.mxu0 0
    %228 = vmatprep.subr.bf16.mxu0 0
    %229 = vmatpush2.bf16.msra.mxu0 0
    %230 = vmatprep.subr.bf16.mxu0 0
    %231 = vmatpush2.bf16.msra.mxu0 0
    %232 = vmatprep.subr.bf16.mxu0 0
    %233 = vmatpush2.bf16.msra.mxu0 0
    %234 = vmatprep.subr.bf16.mxu0 0
    %235 = vmatpush2.bf16.msra.mxu0 0
    %236 = vmatprep.subr.bf16.mxu0 0
    %237 = vmatpush2.bf16.msra.mxu0 0
    %238 = vmatprep.subr.bf16.mxu0 0
    %239 = vmatpush2.bf16.msra.mxu0 0
    %240 = vmatprep.subr.bf16.mxu0 0
    %241 = vmatpush2.bf16.msra.mxu0 0
    %242 = vmatprep.mubr.bf16.mxu0 0
    %243 = vmatmul.mubr.bf16.gmra.mxu0 %v199
    %v244 = vpop.f32.mrf.mxu0
    %v245 = vadd.f32 0.0, %v244
    %v246 = vpop.f32.mrf.mxu0
    %v247 = vpop.f32.mrf.mxu0
    %v248 = vadd.f32 0.0, %v247
    %v249 = vpop.f32.mrf.mxu0
    %250 = vmatprep.mubr.bf16.mxu0 0
    %251 = vmatmul.mubr.bf16.gmra.mxu0 %v202
    %v252 = vpop.f32.mrf.mxu0
    %v253 = vadd.f32 0.0, %v252
    %v254 = vpop.f32.mrf.mxu0
    %v255 = vpop.f32.mrf.mxu0
    %v256 = vadd.f32 0.0, %v255
    %v257 = vpop.f32.mrf.mxu0
    %258 = vmatprep.mubr.bf16.mxu0 0
    %259 = vmatmul.mubr.bf16.gmra.mxu0 %v205
    %v260 = vpop.f32.mrf.mxu0
    %v261 = vadd.f32 0.0, %v260
    %v262 = vpop.f32.mrf.mxu0
    %v263 = vpop.f32.mrf.mxu0
    %v264 = vadd.f32 0.0, %v263
    %v265 = vpop.f32.mrf.mxu0
    %266 = vmatprep.mubr.bf16.mxu0 0
    %267 = vmatmul.mubr.bf16.gmra.mxu0 %v208
    %v268 = vpop.f32.mrf.mxu0
    %v269 = vadd.f32 0.0, %v268
    %v270 = vpop.f32.mrf.mxu0
    %v271 = vpop.f32.mrf.mxu0
    %v272 = vadd.f32 0.0, %v271
    %v273 = vpop.f32.mrf.mxu0
    %274 = vdwg.mxu0
    %v275 = vld [vmem:[%s4] sm:$0xff]
    %v276 = vld [vmem:[%s4 + $0x8] sm:$0xff]
    %vm277 = vcmask 64512
    %v279 = vsel %vm277, %v261, 0
    %v282 = vsel %vm277, %v264, 0
    %v285 = vsel %vm277, %v269, 0
    %v288 = vsel %vm277, %v272, 0
    %290 = vmatprep.subr.mxu0 0.0
    %291 = vmatpush1.msra.mxu0 0.0
    %292 = vmatprep.subr.mxu0 0.0
    %293 = vmatpush1.msra.mxu0 0.0
    %294 = vmatprep.subr.mxu0 0.0
    %295 = vmatpush1.msra.mxu0 0.0
    %296 = vmatprep.subr.mxu0 0.0
    %297 = vmatpush1.msra.mxu0 0.0
    %298 = vmatprep.subr.mxu0 0.0
    %299 = vmatpush1.msra.mxu0 0.0
    %300 = vmatprep.subr.mxu0 0.0
    %301 = vmatpush1.msra.mxu0 0.0
    %302 = vmatprep.subr.mxu0 0.0
    %303 = vmatpush1.msra.mxu0 0.0
    %304 = vmatprep.subr.mxu0 0.0
    %305 = vmatpush1.msra.mxu0 0.0
    %306 = vmatprep.subr.mxu0 0.0
    %307 = vmatpush1.msra.mxu0 0.0
    %308 = vmatprep.subr.mxu0 0.0
    %309 = vmatpush1.msra.mxu0 0.0
    %310 = vmatprep.subr.mxu0 0.0
    %311 = vmatpush1.msra.mxu0 0.0
    %312 = vmatprep.subr.mxu0 0.0
    %313 = vmatpush1.msra.mxu0 0.0
    %314 = vmatprep.subr.mxu0 0.0
    %315 = vmatpush1.msra.mxu0 0.0
    %316 = vmatprep.subr.mxu0 0.0
    %317 = vmatpush1.msra.mxu0 0.0
    %318 = vmatprep.subr.mxu0 0.0
    %319 = vmatpush1.msra.mxu0 0.0
    %320 = vmatprep.subr.mxu0 0.0
    %321 = vmatpush1.msra.mxu0 %v276
    %322 = vmatprep.subr.mxu0 0.0
    %323 = vmatpush2.msra.mxu0 0.0
    %324 = vmatprep.subr.mxu0 0.0
    %325 = vmatpush2.msra.mxu0 0.0
    %326 = vmatprep.subr.mxu0 0.0
    %327 = vmatpush2.msra.mxu0 0.0
    %328 = vmatprep.subr.mxu0 0.0
    %329 = vmatpush2.msra.mxu0 0.0
    %330 = vmatprep.subr.mxu0 0.0
    %331 = vmatpush2.msra.mxu0 0.0
    %332 = vmatprep.subr.mxu0 0.0
    %333 = vmatpush2.msra.mxu0 0.0
    %334 = vmatprep.subr.mxu0 0.0
    %335 = vmatpush2.msra.mxu0 0.0
    %336 = vmatprep.subr.mxu0 0.0
    %337 = vmatpush2.msra.mxu0 0.0
    %338 = vmatprep.subr.mxu0 0.0
    %339 = vmatpush2.msra.mxu0 0.0
    %340 = vmatprep.subr.mxu0 0.0
    %341 = vmatpush2.msra.mxu0 0.0
    %342 = vmatprep.subr.mxu0 0.0
    %343 = vmatpush2.msra.mxu0 0.0
    %344 = vmatprep.subr.mxu0 0.0
    %345 = vmatpush2.msra.mxu0 0.0
    %346 = vmatprep.subr.mxu0 0.0
    %347 = vmatpush2.msra.mxu0 0.0
    %348 = vmatprep.subr.mxu0 0.0
    %349 = vmatpush2.msra.mxu0 0.0
    %350 = vmatprep.subr.mxu0 0.0
    %351 = vmatpush2.msra.mxu0 0.0
    %352 = vmatprep.subr.mxu0 0.0
    %353 = vmatpush2.msra.mxu0 0.0
    %354 = vmatprep.mubr.f32.mxu0 0.0
    %355 = vmatmul.mubr.f32.gmra.mxu0 %v279
    %v356 = vpop.f32.mrf.mxu0
    %v357 = vadd.f32 0.0, %v356
    %v358 = vpop.f32.mrf.mxu0
    %359 = vmatprep.mubr.f32.mxu0 0.0
    %360 = vmatmul.mubr.f32.gmra.mxu0 %v282
    %v361 = vpop.f32.mrf.mxu0
    %v362 = vadd.f32 0.0, %v361
    %v363 = vpop.f32.mrf.mxu0
    %364 = vmatprep.mubr.f32.mxu0 0.0
    %365 = vmatmul.mubr.f32.gmra.mxu0 %v285
    %v366 = vpop.f32.mrf.mxu0
    %v367 = vadd.f32 0.0, %v366
    %v368 = vpop.f32.mrf.mxu0
    %369 = vmatprep.mubr.f32.mxu0 0.0
    %370 = vmatmul.mubr.f32.gmra.mxu0 %v288
    %v371 = vpop.f32.mrf.mxu0
    %v372 = vadd.f32 0.0, %v371
    %v373 = vpop.f32.mrf.mxu0
    %374 = vdwg.mxu0
    %v376 = vsel %vm277, %v245, 0
    %v379 = vsel %vm277, %v248, 0
    %v382 = vsel %vm277, %v253, 0
    %v385 = vsel %vm277, %v256, 0
    %387 = vmatprep.subr.mxu0 0.0
    %388 = vmatpush1.msra.mxu0 0.0
    %389 = vmatprep.subr.mxu0 0.0
    %390 = vmatpush1.msra.mxu0 0.0
    %391 = vmatprep.subr.mxu0 0.0
    %392 = vmatpush1.msra.mxu0 0.0
    %393 = vmatprep.subr.mxu0 0.0
    %394 = vmatpush1.msra.mxu0 0.0
    %395 = vmatprep.subr.mxu0 0.0
    %396 = vmatpush1.msra.mxu0 0.0
    %397 = vmatprep.subr.mxu0 0.0
    %398 = vmatpush1.msra.mxu0 0.0
    %399 = vmatprep.subr.mxu0 0.0
    %400 = vmatpush1.msra.mxu0 0.0
    %401 = vmatprep.subr.mxu0 0.0
    %402 = vmatpush1.msra.mxu0 0.0
    %403 = vmatprep.subr.mxu0 0.0
    %404 = vmatpush1.msra.mxu0 0.0
    %405 = vmatprep.subr.mxu0 0.0
    %406 = vmatpush1.msra.mxu0 0.0
    %407 = vmatprep.subr.mxu0 0.0
    %408 = vmatpush1.msra.mxu0 0.0
    %409 = vmatprep.subr.mxu0 0.0
    %410 = vmatpush1.msra.mxu0 0.0
    %411 = vmatprep.subr.mxu0 0.0
    %412 = vmatpush1.msra.mxu0 0.0
    %413 = vmatprep.subr.mxu0 0.0
    %414 = vmatpush1.msra.mxu0 0.0
    %415 = vmatprep.subr.mxu0 0.0
    %416 = vmatpush1.msra.mxu0 0.0
    %417 = vmatprep.subr.mxu0 0.0
    %418 = vmatpush1.msra.mxu0 %v275
    %419 = vmatprep.subr.mxu0 0.0
    %420 = vmatpush2.msra.mxu0 0.0
    %421 = vmatprep.subr.mxu0 0.0
    %422 = vmatpush2.msra.mxu0 0.0
    %423 = vmatprep.subr.mxu0 0.0
    %424 = vmatpush2.msra.mxu0 0.0
    %425 = vmatprep.subr.mxu0 0.0
    %426 = vmatpush2.msra.mxu0 0.0
    %427 = vmatprep.subr.mxu0 0.0
    %428 = vmatpush2.msra.mxu0 0.0
    %429 = vmatprep.subr.mxu0 0.0
    %430 = vmatpush2.msra.mxu0 0.0
    %431 = vmatprep.subr.mxu0 0.0
    %432 = vmatpush2.msra.mxu0 0.0
    %433 = vmatprep.subr.mxu0 0.0
    %434 = vmatpush2.msra.mxu0 0.0
    %435 = vmatprep.subr.mxu0 0.0
    %436 = vmatpush2.msra.mxu0 0.0
    %437 = vmatprep.subr.mxu0 0.0
    %438 = vmatpush2.msra.mxu0 0.0
    %439 = vmatprep.subr.mxu0 0.0
    %440 = vmatpush2.msra.mxu0 0.0
    %441 = vmatprep.subr.mxu0 0.0
    %442 = vmatpush2.msra.mxu0 0.0
    %443 = vmatprep.subr.mxu0 0.0
    %444 = vmatpush2.msra.mxu0 0.0
    %445 = vmatprep.subr.mxu0 0.0
    %446 = vmatpush2.msra.mxu0 0.0
    %447 = vmatprep.subr.mxu0 0.0
    %448 = vmatpush2.msra.mxu0 0.0
    %449 = vmatprep.subr.mxu0 0.0
    %450 = vmatpush2.msra.mxu0 0.0
    %451 = vmatprep.mubr.f32.mxu0 0.0
    %452 = vmatmul.mubr.f32.gmra.mxu0 %v376
    %v453 = vpop.f32.mrf.mxu0
    %v454 = vadd.f32 %v357, %v453
    %v455 = vpop.f32.mrf.mxu0
    %456 = vmatprep.mubr.f32.mxu0 0.0
    %457 = vmatmul.mubr.f32.gmra.mxu0 %v379
    %v458 = vpop.f32.mrf.mxu0
    %v459 = vadd.f32 %v362, %v458
    %v460 = vpop.f32.mrf.mxu0
    %461 = vmatprep.mubr.f32.mxu0 0.0
    %462 = vmatmul.mubr.f32.gmra.mxu0 %v382
    %v463 = vpop.f32.mrf.mxu0
    %v464 = vadd.f32 %v367, %v463
    %v465 = vpop.f32.mrf.mxu0
    %466 = vmatprep.mubr.f32.mxu0 0.0
    %467 = vmatmul.mubr.f32.gmra.mxu0 %v385
    %v468 = vpop.f32.mrf.mxu0
    %v469 = vadd.f32 %v372, %v468
    %v470 = vpop.f32.mrf.mxu0
    %471 = vdwg.mxu0
    %v472 = vadd.f32 %v454, %v158
    %v473 = vadd.f32 %v459, %v163
    %v474 = vadd.f32 %v464, %v168
    %v475 = vadd.f32 %v469, %v173
    %v476 = vxor.u32 %v472, 2147483648
    %v477 = vxor.u32 %v473, 2147483648
    %v478 = vxor.u32 %v474, 2147483648
    %v479 = vxor.u32 %v475, 2147483648
    %v480 = vmul.f32 %v476, 1.442695
    %v481 = vpow.pop %v480
    %v482 = vmul.f32 %v477, 1.442695
    %v483 = vpow.pop %v482
    %v484 = vmul.f32 %v478, 1.442695
    %v485 = vpow.pop %v484
    %v486 = vmul.f32 %v479, 1.442695
    %v487 = vpow.pop %v486
    %v488 = vadd.f32 %v481, 1.0
    %v489 = vadd.f32 %v483, 1.0
    %v490 = vadd.f32 %v485, 1.0
    %v491 = vadd.f32 %v487, 1.0
    %v492 = vrcp.pop %v488
    %v493 = vmul.f32 1.0, %v492
    %v494 = vrcp.pop %v489
    %v495 = vmul.f32 1.0, %v494
    %v496 = vrcp.pop %v490
    %v497 = vmul.f32 1.0, %v496
    %v498 = vrcp.pop %v491
    %v499 = vmul.f32 1.0, %v498
    %v500 = vmax.f32 %v472, 0.0
    %v501 = vmax.f32 %v473, 0.0
    %v502 = vmax.f32 %v474, 0.0
    %v503 = vmax.f32 %v475, 0.0
    %vm504 = vcmp.ne.f32.partialorder %v472, %v472
    %vm505 = vcmp.ne.f32.partialorder %v473, %v473
    %vm506 = vcmp.ne.f32.partialorder %v474, %v474
    %vm507 = vcmp.ne.f32.partialorder %v475, %v475
    %v508 = vadd.f32 %v472, 0.0
    %v509 = vadd.f32 %v473, 0.0
    %v510 = vadd.f32 %v474, 0.0
    %v511 = vadd.f32 %v475, 0.0
    %v512 = vand.u32 2147483647, %v472
    %v513 = vand.u32 2147483647, %v473
    %v514 = vand.u32 2147483647, %v474
    %v515 = vand.u32 2147483647, %v475
    %v516 = vsub.f32 0.0, %v512
    %v517 = vsub.f32 0.0, %v513
    %v518 = vsub.f32 0.0, %v514
    %v519 = vsub.f32 0.0, %v515
    %v520 = vmul.f32 %v516, 1.442695
    %v521 = vpow.pop %v520
    %v522 = vmul.f32 %v517, 1.442695
    %v523 = vpow.pop %v522
    %v524 = vmul.f32 %v518, 1.442695
    %v525 = vpow.pop %v524
    %v526 = vmul.f32 %v519, 1.442695
    %v527 = vpow.pop %v526
    %v528 = vadd.f32 %v521, 1.0
    %v529 = vlog2.pop %v528
    %v530 = vmul.f32 %v529, 0.6931472
    %v531 = vmul.f32 -0.5, %v521
    %v532 = vadd.f32 %v531, 1.0
    %v533 = vmul.f32 %v532, %v521
    %v534 = vand.u32 2147483647, %v521
    %vm535 = vcmp.lt.f32.partialorder %v534, 0.0004427343
    %v536 = vsel %vm535, %v533, %v530
    %v537 = vadd.f32 %v523, 1.0
    %v538 = vlog2.pop %v537
    %v539 = vmul.f32 %v538, 0.6931472
    %v540 = vmul.f32 -0.5, %v523
    %v541 = vadd.f32 %v540, 1.0
    %v542 = vmul.f32 %v541, %v523
    %v543 = vand.u32 2147483647, %v523
    %vm544 = vcmp.lt.f32.partialorder %v543, 0.0004427343
    %v545 = vsel %vm544, %v542, %v539
    %v546 = vadd.f32 %v525, 1.0
    %v547 = vlog2.pop %v546
    %v548 = vmul.f32 %v547, 0.6931472
    %v549 = vmul.f32 -0.5, %v525
    %v550 = vadd.f32 %v549, 1.0
    %v551 = vmul.f32 %v550, %v525
    %v552 = vand.u32 2147483647, %v525
    %vm553 = vcmp.lt.f32.partialorder %v552, 0.0004427343
    %v554 = vsel %vm553, %v551, %v548
    %v555 = vadd.f32 %v527, 1.0
    %v556 = vlog2.pop %v555
    %v557 = vmul.f32 %v556, 0.6931472
    %v558 = vmul.f32 -0.5, %v527
    %v559 = vadd.f32 %v558, 1.0
    %v560 = vmul.f32 %v559, %v527
    %v561 = vand.u32 2147483647, %v527
    %vm562 = vcmp.lt.f32.partialorder %v561, 0.0004427343
    %v563 = vsel %vm562, %v560, %v557
    %v564 = vadd.f32 %v500, %v536
    %v565 = vadd.f32 %v501, %v545
    %v566 = vadd.f32 %v502, %v554
    %v567 = vadd.f32 %v503, %v563
    %v568 = vsel %vm504, %v508, %v564
    %v569 = vsel %vm505, %v509, %v565
    %v570 = vsel %vm506, %v510, %v566
    %v571 = vsel %vm507, %v511, %v567
    %576 = vrot.lane.b32.xlu0 %v568, 120
    %v577 = vpop.permute.xlu0 %576
    %578 = vrot.lane.b32.xlu0 %v569, 120
    %v579 = vpop.permute.xlu0 %578
    %580 = vrot.lane.b32.xlu0 %v570, 120
    %v581 = vpop.permute.xlu0 %580
    %582 = vrot.lane.b32.xlu0 %v571, 120
    %v583 = vpop.permute.xlu0 %582
    %v588 = vmul.f32 %v493, %v577
    %v589 = vmul.f32 %v495, %v579
    %v590 = vmul.f32 %v497, %v581
    %v591 = vmul.f32 %v499, %v583
    %v592 = vpack.c.bf16 %v589, %v588
    %v593 = vpack.c.bf16 %v591, %v590
    %596 = vxpose.xlu0.c.b16.start [1/8] %v193, 128
    %597 = vxpose.xlu0.c.b16.cont [2/8] %v194, 128
    %598 = vxpose.xlu0.c.b16.cont [3/8] 0, 128
    %599 = vxpose.xlu0.c.b16.cont [4/8] 0, 128
    %600 = vxpose.xlu0.c.b16.cont [5/8] 0, 128
    %601 = vxpose.xlu0.c.b16.cont [6/8] 0, 128
    %602 = vxpose.xlu0.c.b16.cont [7/8] 0, 128
    %603 = vxpose.xlu0.c.b16.end [8/8] 0, 128
    %v604 = vpop.trf.xlu0
    %v605 = vpop.trf.xlu0
    %v606 = vpop.trf.xlu0
    %v607 = vpop.trf.xlu0
    %v608 = vpop.trf.xlu0
    %v609 = vpop.trf.xlu0
    %v610 = vpop.trf.xlu0
    %v611 = vpop.trf.xlu0
    %vm612 = vcmask 261120
    %v614 = vsel %vm612, %v604, 0
    %616 = vmatprep.subr.bf16.mxu0 0
    %617 = vmatpush1.bf16.msra.mxu0 0
    %618 = vmatprep.subr.bf16.mxu0 0
    %619 = vmatpush1.bf16.msra.mxu0 0
    %620 = vmatprep.subr.bf16.mxu0 0
    %621 = vmatpush1.bf16.msra.mxu0 0
    %622 = vmatprep.subr.bf16.mxu0 0
    %623 = vmatpush1.bf16.msra.mxu0 0
    %624 = vmatprep.subr.bf16.mxu0 0
    %625 = vmatpush1.bf16.msra.mxu0 0
    %626 = vmatprep.subr.bf16.mxu0 0
    %627 = vmatpush1.bf16.msra.mxu0 0
    %628 = vmatprep.subr.bf16.mxu0 0
    %629 = vmatpush1.bf16.msra.mxu0 %v593
    %630 = vmatprep.subr.bf16.mxu0 0
    %631 = vmatpush1.bf16.msra.mxu0 %v592
    %632 = vmatprep.subr.bf16.mxu0 0
    %633 = vmatpush2.bf16.msra.mxu0 0
    %634 = vmatprep.subr.bf16.mxu0 0
    %635 = vmatpush2.bf16.msra.mxu0 0
    %636 = vmatprep.subr.bf16.mxu0 0
    %637 = vmatpush2.bf16.msra.mxu0 0
    %638 = vmatprep.subr.bf16.mxu0 0
    %639 = vmatpush2.bf16.msra.mxu0 0
    %640 = vmatprep.subr.bf16.mxu0 0
    %641 = vmatpush2.bf16.msra.mxu0 0
    %642 = vmatprep.subr.bf16.mxu0 0
    %643 = vmatpush2.bf16.msra.mxu0 0
    %644 = vmatprep.subr.bf16.mxu0 0
    %645 = vmatpush2.bf16.msra.mxu0 0
    %646 = vmatprep.subr.bf16.mxu0 0
    %647 = vmatpush2.bf16.msra.mxu0 0
    %648 = vmatprep.mubr.bf16.mxu0 0
    %649 = vmatmul.mubr.bf16.gmra.mxu0 %v614
    %v650 = vpop.f32.mrf.mxu0
    %v651 = vadd.f32 0.0, %v650
    %v652 = vpop.f32.mrf.mxu0
    %v653 = vpop.f32.mrf.mxu0
    %v654 = vadd.f32 0.0, %v653
    %v655 = vpop.f32.mrf.mxu0
    %656 = vdwg.mxu0
    %v657 = vld [vmem:[%s7] sm:$0x1]
    %v658 = vlaneseq
    %v659 = vshrl.u32 %v658, 7
    %v660 = vsub.s32 0, %v659
    %v661 = vrot.slane %v657, %v660
    %v662 = vmul.f32 %v651, %v661
    %v663 = vmul.f32 %v654, %v661
    %v664 = vadd.f32 %v52, %v662
    %v665 = vadd.f32 %v53, %v663
    %v666 = vld [vmem:[%s8] sm:$0x1]
    %v667 = vlaneseq
    %v668 = vshrl.u32 %v667, 7
    %v669 = vsub.s32 0, %v668
    %v670 = vrot.slane %v666, %v669
    %v671 = vadd.f32 %v664, %v670
    %v672 = vadd.f32 %v665, %v670
    %v673 = vpack.c.bf16 %v672, %v671
    %674 = vmatprep.subr.bf16.mxu0 0
    %675 = vmatpush1.bf16.msra.mxu0 0
    %676 = vmatprep.subr.bf16.mxu0 0
    %677 = vmatpush1.bf16.msra.mxu0 0
    %678 = vmatprep.subr.bf16.mxu0 0
    %679 = vmatpush1.bf16.msra.mxu0 0
    %680 = vmatprep.subr.bf16.mxu0 0
    %681 = vmatpush1.bf16.msra.mxu0 0
    %682 = vmatprep.subr.bf16.mxu0 0
    %683 = vmatpush1.bf16.msra.mxu0 0
    %684 = vmatprep.subr.bf16.mxu0 0
    %685 = vmatpush1.bf16.msra.mxu0 0
    %686 = vmatprep.subr.bf16.mxu0 0
    %687 = vmatpush1.bf16.msra.mxu0 0
    %688 = vmatprep.subr.bf16.mxu0 0
    %689 = vmatpush1.bf16.msra.mxu0 %v673
    %690 = vmatprep.subr.bf16.mxu0 0
    %691 = vmatpush2.bf16.msra.mxu0 0
    %692 = vmatprep.subr.bf16.mxu0 0
    %693 = vmatpush2.bf16.msra.mxu0 0
    %694 = vmatprep.subr.bf16.mxu0 0
    %695 = vmatpush2.bf16.msra.mxu0 0
    %696 = vmatprep.subr.bf16.mxu0 0
    %697 = vmatpush2.bf16.msra.mxu0 0
    %698 = vmatprep.subr.bf16.mxu0 0
    %699 = vmatpush2.bf16.msra.mxu0 0
    %700 = vmatprep.subr.bf16.mxu0 0
    %701 = vmatpush2.bf16.msra.mxu0 0
    %702 = vmatprep.subr.bf16.mxu0 0
    %703 = vmatpush2.bf16.msra.mxu0 0
    %704 = vmatprep.subr.bf16.mxu0 0
    %705 = vmatpush2.bf16.msra.mxu0 0
    %706 = vmatprep.mubr.bf16.mxu0 0
    %707 = vmatmul.mubr.bf16.gmra.mxu0 %v199
    %v708 = vpop.f32.mrf.mxu0
    %v709 = vadd.f32 0.0, %v708
    %v710 = vpop.f32.mrf.mxu0
    %v711 = vpop.f32.mrf.mxu0
    %v712 = vadd.f32 0.0, %v711
    %v713 = vpop.f32.mrf.mxu0
    %714 = vmatprep.mubr.bf16.mxu0 0
    %715 = vmatmul.mubr.bf16.gmra.mxu0 %v202
    %v716 = vpop.f32.mrf.mxu0
    %v717 = vadd.f32 0.0, %v716
    %v718 = vpop.f32.mrf.mxu0
    %v719 = vpop.f32.mrf.mxu0
    %v720 = vadd.f32 0.0, %v719
    %v721 = vpop.f32.mrf.mxu0
    %722 = vmatprep.mubr.bf16.mxu0 0
    %723 = vmatmul.mubr.bf16.gmra.mxu0 %v205
    %v724 = vpop.f32.mrf.mxu0
    %v725 = vadd.f32 0.0, %v724
    %v726 = vpop.f32.mrf.mxu0
    %v727 = vpop.f32.mrf.mxu0
    %v728 = vadd.f32 0.0, %v727
    %v729 = vpop.f32.mrf.mxu0
    %730 = vmatprep.mubr.bf16.mxu0 0
    %731 = vmatmul.mubr.bf16.gmra.mxu0 %v208
    %v732 = vpop.f32.mrf.mxu0
    %v733 = vadd.f32 0.0, %v732
    %v734 = vpop.f32.mrf.mxu0
    %v735 = vpop.f32.mrf.mxu0
    %v736 = vadd.f32 0.0, %v735
    %v737 = vpop.f32.mrf.mxu0
    %738 = vdwg.mxu0
    %s739 = scalar_lea.vmem %s4, 16
    %v740 = vld [vmem:[%s739] sm:$0xff]
    %v741 = vld [vmem:[%s739 + $0x8] sm:$0xff]
    %v743 = vsel %vm277, %v725, 0
    %v746 = vsel %vm277, %v728, 0
    %v749 = vsel %vm277, %v733, 0
    %v752 = vsel %vm277, %v736, 0
    %754 = vmatprep.subr.mxu0 0.0
    %755 = vmatpush1.msra.mxu0 0.0
    %756 = vmatprep.subr.mxu0 0.0
    %757 = vmatpush1.msra.mxu0 0.0
    %758 = vmatprep.subr.mxu0 0.0
    %759 = vmatpush1.msra.mxu0 0.0
    %760 = vmatprep.subr.mxu0 0.0
    %761 = vmatpush1.msra.mxu0 0.0
    %762 = vmatprep.subr.mxu0 0.0
    %763 = vmatpush1.msra.mxu0 0.0
    %764 = vmatprep.subr.mxu0 0.0
    %765 = vmatpush1.msra.mxu0 0.0
    %766 = vmatprep.subr.mxu0 0.0
    %767 = vmatpush1.msra.mxu0 0.0
    %768 = vmatprep.subr.mxu0 0.0
    %769 = vmatpush1.msra.mxu0 0.0
    %770 = vmatprep.subr.mxu0 0.0
    %771 = vmatpush1.msra.mxu0 0.0
    %772 = vmatprep.subr.mxu0 0.0
    %773 = vmatpush1.msra.mxu0 0.0
    %774 = vmatprep.subr.mxu0 0.0
    %775 = vmatpush1.msra.mxu0 0.0
    %776 = vmatprep.subr.mxu0 0.0
    %777 = vmatpush1.msra.mxu0 0.0
    %778 = vmatprep.subr.mxu0 0.0
    %779 = vmatpush1.msra.mxu0 0.0
    %780 = vmatprep.subr.mxu0 0.0
    %781 = vmatpush1.msra.mxu0 0.0
    %782 = vmatprep.subr.mxu0 0.0
    %783 = vmatpush1.msra.mxu0 0.0
    %784 = vmatprep.subr.mxu0 0.0
    %785 = vmatpush1.msra.mxu0 %v741
    %786 = vmatprep.subr.mxu0 0.0
    %787 = vmatpush2.msra.mxu0 0.0
    %788 = vmatprep.subr.mxu0 0.0
    %789 = vmatpush2.msra.mxu0 0.0
    %790 = vmatprep.subr.mxu0 0.0
    %791 = vmatpush2.msra.mxu0 0.0
    %792 = vmatprep.subr.mxu0 0.0
    %793 = vmatpush2.msra.mxu0 0.0
    %794 = vmatprep.subr.mxu0 0.0
    %795 = vmatpush2.msra.mxu0 0.0
    %796 = vmatprep.subr.mxu0 0.0
    %797 = vmatpush2.msra.mxu0 0.0
    %798 = vmatprep.subr.mxu0 0.0
    %799 = vmatpush2.msra.mxu0 0.0
    %800 = vmatprep.subr.mxu0 0.0
    %801 = vmatpush2.msra.mxu0 0.0
    %802 = vmatprep.subr.mxu0 0.0
    %803 = vmatpush2.msra.mxu0 0.0
    %804 = vmatprep.subr.mxu0 0.0
    %805 = vmatpush2.msra.mxu0 0.0
    %806 = vmatprep.subr.mxu0 0.0
    %807 = vmatpush2.msra.mxu0 0.0
    %808 = vmatprep.subr.mxu0 0.0
    %809 = vmatpush2.msra.mxu0 0.0
    %810 = vmatprep.subr.mxu0 0.0
    %811 = vmatpush2.msra.mxu0 0.0
    %812 = vmatprep.subr.mxu0 0.0
    %813 = vmatpush2.msra.mxu0 0.0
    %814 = vmatprep.subr.mxu0 0.0
    %815 = vmatpush2.msra.mxu0 0.0
    %816 = vmatprep.subr.mxu0 0.0
    %817 = vmatpush2.msra.mxu0 0.0
    %818 = vmatprep.mubr.f32.mxu0 0.0
    %819 = vmatmul.mubr.f32.gmra.mxu0 %v743
    %v820 = vpop.f32.mrf.mxu0
    %v821 = vadd.f32 0.0, %v820
    %v822 = vpop.f32.mrf.mxu0
    %823 = vmatprep.mubr.f32.mxu0 0.0
    %824 = vmatmul.mubr.f32.gmra.mxu0 %v746
    %v825 = vpop.f32.mrf.mxu0
    %v826 = vadd.f32 0.0, %v825
    %v827 = vpop.f32.mrf.mxu0
    %828 = vmatprep.mubr.f32.mxu0 0.0
    %829 = vmatmul.mubr.f32.gmra.mxu0 %v749
    %v830 = vpop.f32.mrf.mxu0
    %v831 = vadd.f32 0.0, %v830
    %v832 = vpop.f32.mrf.mxu0
    %833 = vmatprep.mubr.f32.mxu0 0.0
    %834 = vmatmul.mubr.f32.gmra.mxu0 %v752
    %v835 = vpop.f32.mrf.mxu0
    %v836 = vadd.f32 0.0, %v835
    %v837 = vpop.f32.mrf.mxu0
    %838 = vdwg.mxu0
    %v840 = vsel %vm277, %v709, 0
    %v843 = vsel %vm277, %v712, 0
    %v846 = vsel %vm277, %v717, 0
    %v849 = vsel %vm277, %v720, 0
    %851 = vmatprep.subr.mxu0 0.0
    %852 = vmatpush1.msra.mxu0 0.0
    %853 = vmatprep.subr.mxu0 0.0
    %854 = vmatpush1.msra.mxu0 0.0
    %855 = vmatprep.subr.mxu0 0.0
    %856 = vmatpush1.msra.mxu0 0.0
    %857 = vmatprep.subr.mxu0 0.0
    %858 = vmatpush1.msra.mxu0 0.0
    %859 = vmatprep.subr.mxu0 0.0
    %860 = vmatpush1.msra.mxu0 0.0
    %861 = vmatprep.subr.mxu0 0.0
    %862 = vmatpush1.msra.mxu0 0.0
    %863 = vmatprep.subr.mxu0 0.0
    %864 = vmatpush1.msra.mxu0 0.0
    %865 = vmatprep.subr.mxu0 0.0
    %866 = vmatpush1.msra.mxu0 0.0
    %867 = vmatprep.subr.mxu0 0.0
    %868 = vmatpush1.msra.mxu0 0.0
    %869 = vmatprep.subr.mxu0 0.0
    %870 = vmatpush1.msra.mxu0 0.0
    %871 = vmatprep.subr.mxu0 0.0
    %872 = vmatpush1.msra.mxu0 0.0
    %873 = vmatprep.subr.mxu0 0.0
    %874 = vmatpush1.msra.mxu0 0.0
    %875 = vmatprep.subr.mxu0 0.0
    %876 = vmatpush1.msra.mxu0 0.0
    %877 = vmatprep.subr.mxu0 0.0
    %878 = vmatpush1.msra.mxu0 0.0
    %879 = vmatprep.subr.mxu0 0.0
    %880 = vmatpush1.msra.mxu0 0.0
    %881 = vmatprep.subr.mxu0 0.0
    %882 = vmatpush1.msra.mxu0 %v740
    %883 = vmatprep.subr.mxu0 0.0
    %884 = vmatpush2.msra.mxu0 0.0
    %885 = vmatprep.subr.mxu0 0.0
    %886 = vmatpush2.msra.mxu0 0.0
    %887 = vmatprep.subr.mxu0 0.0
    %888 = vmatpush2.msra.mxu0 0.0
    %889 = vmatprep.subr.mxu0 0.0
    %890 = vmatpush2.msra.mxu0 0.0
    %891 = vmatprep.subr.mxu0 0.0
    %892 = vmatpush2.msra.mxu0 0.0
    %893 = vmatprep.subr.mxu0 0.0
    %894 = vmatpush2.msra.mxu0 0.0
    %895 = vmatprep.subr.mxu0 0.0
    %896 = vmatpush2.msra.mxu0 0.0
    %897 = vmatprep.subr.mxu0 0.0
    %898 = vmatpush2.msra.mxu0 0.0
    %899 = vmatprep.subr.mxu0 0.0
    %900 = vmatpush2.msra.mxu0 0.0
    %901 = vmatprep.subr.mxu0 0.0
    %902 = vmatpush2.msra.mxu0 0.0
    %903 = vmatprep.subr.mxu0 0.0
    %904 = vmatpush2.msra.mxu0 0.0
    %905 = vmatprep.subr.mxu0 0.0
    %906 = vmatpush2.msra.mxu0 0.0
    %907 = vmatprep.subr.mxu0 0.0
    %908 = vmatpush2.msra.mxu0 0.0
    %909 = vmatprep.subr.mxu0 0.0
    %910 = vmatpush2.msra.mxu0 0.0
    %911 = vmatprep.subr.mxu0 0.0
    %912 = vmatpush2.msra.mxu0 0.0
    %913 = vmatprep.subr.mxu0 0.0
    %914 = vmatpush2.msra.mxu0 0.0
    %915 = vmatprep.mubr.f32.mxu0 0.0
    %916 = vmatmul.mubr.f32.gmra.mxu0 %v840
    %v917 = vpop.f32.mrf.mxu0
    %v918 = vadd.f32 %v821, %v917
    %v919 = vpop.f32.mrf.mxu0
    %920 = vmatprep.mubr.f32.mxu0 0.0
    %921 = vmatmul.mubr.f32.gmra.mxu0 %v843
    %v922 = vpop.f32.mrf.mxu0
    %v923 = vadd.f32 %v826, %v922
    %v924 = vpop.f32.mrf.mxu0
    %925 = vmatprep.mubr.f32.mxu0 0.0
    %926 = vmatmul.mubr.f32.gmra.mxu0 %v846
    %v927 = vpop.f32.mrf.mxu0
    %v928 = vadd.f32 %v831, %v927
    %v929 = vpop.f32.mrf.mxu0
    %930 = vmatprep.mubr.f32.mxu0 0.0
    %931 = vmatmul.mubr.f32.gmra.mxu0 %v849
    %v932 = vpop.f32.mrf.mxu0
    %v933 = vadd.f32 %v836, %v932
    %v934 = vpop.f32.mrf.mxu0
    %935 = vdwg.mxu0
    %940 = vrot.lane.b32.xlu0 %v158, 112
    %v941 = vpop.permute.xlu0 %940
    %942 = vrot.lane.b32.xlu0 %v163, 112
    %v943 = vpop.permute.xlu0 %942
    %944 = vrot.lane.b32.xlu0 %v168, 112
    %v945 = vpop.permute.xlu0 %944
    %946 = vrot.lane.b32.xlu0 %v173, 112
    %v947 = vpop.permute.xlu0 %946
    %v952 = vadd.f32 %v918, %v941
    %v953 = vadd.f32 %v923, %v943
    %v954 = vadd.f32 %v928, %v945
    %v955 = vadd.f32 %v933, %v947
    %v956 = vxor.u32 %v952, 2147483648
    %v957 = vxor.u32 %v953, 2147483648
    %v958 = vxor.u32 %v954, 2147483648
    %v959 = vxor.u32 %v955, 2147483648
    %v960 = vmul.f32 %v956, 1.442695
    %v961 = vpow.pop %v960
    %v962 = vmul.f32 %v957, 1.442695
    %v963 = vpow.pop %v962
    %v964 = vmul.f32 %v958, 1.442695
    %v965 = vpow.pop %v964
    %v966 = vmul.f32 %v959, 1.442695
    %v967 = vpow.pop %v966
    %v968 = vadd.f32 %v961, 1.0
    %v969 = vadd.f32 %v963, 1.0
    %v970 = vadd.f32 %v965, 1.0
    %v971 = vadd.f32 %v967, 1.0
    %v972 = vrcp.pop %v968
    %v973 = vmul.f32 1.0, %v972
    %v974 = vrcp.pop %v969
    %v975 = vmul.f32 1.0, %v974
    %v976 = vrcp.pop %v970
    %v977 = vmul.f32 1.0, %v976
    %v978 = vrcp.pop %v971
    %v979 = vmul.f32 1.0, %v978
    %v980 = vmax.f32 %v952, 0.0
    %v981 = vmax.f32 %v953, 0.0
    %v982 = vmax.f32 %v954, 0.0
    %v983 = vmax.f32 %v955, 0.0
    %vm984 = vcmp.ne.f32.partialorder %v952, %v952
    %vm985 = vcmp.ne.f32.partialorder %v953, %v953
    %vm986 = vcmp.ne.f32.partialorder %v954, %v954
    %vm987 = vcmp.ne.f32.partialorder %v955, %v955
    %v988 = vadd.f32 %v952, 0.0
    %v989 = vadd.f32 %v953, 0.0
    %v990 = vadd.f32 %v954, 0.0
    %v991 = vadd.f32 %v955, 0.0
    %v992 = vand.u32 2147483647, %v952
    %v993 = vand.u32 2147483647, %v953
    %v994 = vand.u32 2147483647, %v954
    %v995 = vand.u32 2147483647, %v955
    %v996 = vsub.f32 0.0, %v992
    %v997 = vsub.f32 0.0, %v993
    %v998 = vsub.f32 0.0, %v994
    %v999 = vsub.f32 0.0, %v995
    %v1000 = vmul.f32 %v996, 1.442695
    %v1001 = vpow.pop %v1000
    %v1002 = vmul.f32 %v997, 1.442695
    %v1003 = vpow.pop %v1002
    %v1004 = vmul.f32 %v998, 1.442695
    %v1005 = vpow.pop %v1004
    %v1006 = vmul.f32 %v999, 1.442695
    %v1007 = vpow.pop %v1006
    %v1008 = vadd.f32 %v1001, 1.0
    %v1009 = vlog2.pop %v1008
    %v1010 = vmul.f32 %v1009, 0.6931472
    %v1011 = vmul.f32 -0.5, %v1001
    %v1012 = vadd.f32 %v1011, 1.0
    %v1013 = vmul.f32 %v1012, %v1001
    %v1014 = vand.u32 2147483647, %v1001
    %vm1015 = vcmp.lt.f32.partialorder %v1014, 0.0004427343
    %v1016 = vsel %vm1015, %v1013, %v1010
    %v1017 = vadd.f32 %v1003, 1.0
    %v1018 = vlog2.pop %v1017
    %v1019 = vmul.f32 %v1018, 0.6931472
    %v1020 = vmul.f32 -0.5, %v1003
    %v1021 = vadd.f32 %v1020, 1.0
    %v1022 = vmul.f32 %v1021, %v1003
    %v1023 = vand.u32 2147483647, %v1003
    %vm1024 = vcmp.lt.f32.partialorder %v1023, 0.0004427343
    %v1025 = vsel %vm1024, %v1022, %v1019
    %v1026 = vadd.f32 %v1005, 1.0
    %v1027 = vlog2.pop %v1026
    %v1028 = vmul.f32 %v1027, 0.6931472
    %v1029 = vmul.f32 -0.5, %v1005
    %v1030 = vadd.f32 %v1029, 1.0
    %v1031 = vmul.f32 %v1030, %v1005
    %v1032 = vand.u32 2147483647, %v1005
    %vm1033 = vcmp.lt.f32.partialorder %v1032, 0.0004427343
    %v1034 = vsel %vm1033, %v1031, %v1028
    %v1035 = vadd.f32 %v1007, 1.0
    %v1036 = vlog2.pop %v1035
    %v1037 = vmul.f32 %v1036, 0.6931472
    %v1038 = vmul.f32 -0.5, %v1007
    %v1039 = vadd.f32 %v1038, 1.0
    %v1040 = vmul.f32 %v1039, %v1007
    %v1041 = vand.u32 2147483647, %v1007
    %vm1042 = vcmp.lt.f32.partialorder %v1041, 0.0004427343
    %v1043 = vsel %vm1042, %v1040, %v1037
    %v1044 = vadd.f32 %v980, %v1016
    %v1045 = vadd.f32 %v981, %v1025
    %v1046 = vadd.f32 %v982, %v1034
    %v1047 = vadd.f32 %v983, %v1043
    %v1048 = vsel %vm984, %v988, %v1044
    %v1049 = vsel %vm985, %v989, %v1045
    %v1050 = vsel %vm986, %v990, %v1046
    %v1051 = vsel %vm987, %v991, %v1047
    %1056 = vrot.lane.b32.xlu0 %v1048, 120
    %v1057 = vpop.permute.xlu0 %1056
    %1058 = vrot.lane.b32.xlu0 %v1049, 120
    %v1059 = vpop.permute.xlu0 %1058
    %1060 = vrot.lane.b32.xlu0 %v1050, 120
    %v1061 = vpop.permute.xlu0 %1060
    %1062 = vrot.lane.b32.xlu0 %v1051, 120
    %v1063 = vpop.permute.xlu0 %1062
    %v1068 = vmul.f32 %v973, %v1057
    %v1069 = vmul.f32 %v975, %v1059
    %v1070 = vmul.f32 %v977, %v1061
    %v1071 = vmul.f32 %v979, %v1063
    %v1072 = vpack.c.bf16 %v1069, %v1068
    %v1073 = vpack.c.bf16 %v1071, %v1070
    %1074 = vmatprep.subr.bf16.mxu0 0
    %1075 = vmatpush1.bf16.msra.mxu0 0
    %1076 = vmatprep.subr.bf16.mxu0 0
    %1077 = vmatpush1.bf16.msra.mxu0 0
    %1078 = vmatprep.subr.bf16.mxu0 0
    %1079 = vmatpush1.bf16.msra.mxu0 0
    %1080 = vmatprep.subr.bf16.mxu0 0
    %1081 = vmatpush1.bf16.msra.mxu0 0
    %1082 = vmatprep.subr.bf16.mxu0 0
    %1083 = vmatpush1.bf16.msra.mxu0 0
    %1084 = vmatprep.subr.bf16.mxu0 0
    %1085 = vmatpush1.bf16.msra.mxu0 0
    %1086 = vmatprep.subr.bf16.mxu0 0
    %1087 = vmatpush1.bf16.msra.mxu0 %v1073
    %1088 = vmatprep.subr.bf16.mxu0 0
    %1089 = vmatpush1.bf16.msra.mxu0 %v1072
    %1090 = vmatprep.subr.bf16.mxu0 0
    %1091 = vmatpush2.bf16.msra.mxu0 0
    %1092 = vmatprep.subr.bf16.mxu0 0
    %1093 = vmatpush2.bf16.msra.mxu0 0
    %1094 = vmatprep.subr.bf16.mxu0 0
    %1095 = vmatpush2.bf16.msra.mxu0 0
    %1096 = vmatprep.subr.bf16.mxu0 0
    %1097 = vmatpush2.bf16.msra.mxu0 0
    %1098 = vmatprep.subr.bf16.mxu0 0
    %1099 = vmatpush2.bf16.msra.mxu0 0
    %1100 = vmatprep.subr.bf16.mxu0 0
    %1101 = vmatpush2.bf16.msra.mxu0 0
    %1102 = vmatprep.subr.bf16.mxu0 0
    %1103 = vmatpush2.bf16.msra.mxu0 0
    %1104 = vmatprep.subr.bf16.mxu0 0
    %1105 = vmatpush2.bf16.msra.mxu0 0
    %1106 = vmatprep.mubr.bf16.mxu0 0
    %1107 = vmatmul.mubr.bf16.gmra.mxu0 %v614
    %v1108 = vpop.f32.mrf.mxu0
    %v1109 = vadd.f32 0.0, %v1108
    %v1110 = vpop.f32.mrf.mxu0
    %v1111 = vpop.f32.mrf.mxu0
    %v1112 = vadd.f32 0.0, %v1111
    %v1113 = vpop.f32.mrf.mxu0
    %1114 = vdwg.mxu0
    %v1115 = vld [vmem:[%s7 + $0x1] sm:$0x1]
    %v1116 = vlaneseq
    %v1117 = vshrl.u32 %v1116, 7
    %v1118 = vsub.s32 0, %v1117
    %v1119 = vrot.slane %v1115, %v1118
    %v1120 = vmul.f32 %v1109, %v1119
    %v1121 = vmul.f32 %v1112, %v1119
    %v1122 = vadd.f32 %v671, %v1120
    %v1123 = vadd.f32 %v672, %v1121
    %v1124 = vld [vmem:[%s8 + $0x1] sm:$0x1]
    %v1125 = vlaneseq
    %v1126 = vshrl.u32 %v1125, 7
    %v1127 = vsub.s32 0, %v1126
    %v1128 = vrot.slane %v1124, %v1127
    %v1129 = vadd.f32 %v1122, %v1128
    %v1130 = vadd.f32 %v1123, %v1128
    %v1131 = vpack.c.bf16 %v1130, %v1129
    %1132 = vmatprep.subr.bf16.mxu0 0
    %1133 = vmatpush1.bf16.msra.mxu0 0
    %1134 = vmatprep.subr.bf16.mxu0 0
    %1135 = vmatpush1.bf16.msra.mxu0 0
    %1136 = vmatprep.subr.bf16.mxu0 0
    %1137 = vmatpush1.bf16.msra.mxu0 0
    %1138 = vmatprep.subr.bf16.mxu0 0
    %1139 = vmatpush1.bf16.msra.mxu0 0
    %1140 = vmatprep.subr.bf16.mxu0 0
    %1141 = vmatpush1.bf16.msra.mxu0 0
    %1142 = vmatprep.subr.bf16.mxu0 0
    %1143 = vmatpush1.bf16.msra.mxu0 0
    %1144 = vmatprep.subr.bf16.mxu0 0
    %1145 = vmatpush1.bf16.msra.mxu0 0
    %1146 = vmatprep.subr.bf16.mxu0 0
    %1147 = vmatpush1.bf16.msra.mxu0 %v1131
    %1148 = vmatprep.subr.bf16.mxu0 0
    %1149 = vmatpush2.bf16.msra.mxu0 0
    %1150 = vmatprep.subr.bf16.mxu0 0
    %1151 = vmatpush2.bf16.msra.mxu0 0
    %1152 = vmatprep.subr.bf16.mxu0 0
    %1153 = vmatpush2.bf16.msra.mxu0 0
    %1154 = vmatprep.subr.bf16.mxu0 0
    %1155 = vmatpush2.bf16.msra.mxu0 0
    %1156 = vmatprep.subr.bf16.mxu0 0
    %1157 = vmatpush2.bf16.msra.mxu0 0
    %1158 = vmatprep.subr.bf16.mxu0 0
    %1159 = vmatpush2.bf16.msra.mxu0 0
    %1160 = vmatprep.subr.bf16.mxu0 0
    %1161 = vmatpush2.bf16.msra.mxu0 0
    %1162 = vmatprep.subr.bf16.mxu0 0
    %1163 = vmatpush2.bf16.msra.mxu0 0
    %1164 = vmatprep.mubr.bf16.mxu0 0
    %1165 = vmatmul.mubr.bf16.gmra.mxu0 %v199
    %v1166 = vpop.f32.mrf.mxu0
    %v1167 = vadd.f32 0.0, %v1166
    %v1168 = vpop.f32.mrf.mxu0
    %v1169 = vpop.f32.mrf.mxu0
    %v1170 = vadd.f32 0.0, %v1169
    %v1171 = vpop.f32.mrf.mxu0
    %1172 = vmatprep.mubr.bf16.mxu0 0
    %1173 = vmatmul.mubr.bf16.gmra.mxu0 %v202
    %v1174 = vpop.f32.mrf.mxu0
    %v1175 = vadd.f32 0.0, %v1174
    %v1176 = vpop.f32.mrf.mxu0
    %v1177 = vpop.f32.mrf.mxu0
    %v1178 = vadd.f32 0.0, %v1177
    %v1179 = vpop.f32.mrf.mxu0
    %1180 = vmatprep.mubr.bf16.mxu0 0
    %1181 = vmatmul.mubr.bf16.gmra.mxu0 %v205
    %v1182 = vpop.f32.mrf.mxu0
    %v1183 = vadd.f32 0.0, %v1182
    %v1184 = vpop.f32.mrf.mxu0
    %v1185 = vpop.f32.mrf.mxu0
    %v1186 = vadd.f32 0.0, %v1185
    %v1187 = vpop.f32.mrf.mxu0
    %1188 = vmatprep.mubr.bf16.mxu0 0
    %1189 = vmatmul.mubr.bf16.gmra.mxu0 %v208
    %v1190 = vpop.f32.mrf.mxu0
    %v1191 = vadd.f32 0.0, %v1190
    %v1192 = vpop.f32.mrf.mxu0
    %v1193 = vpop.f32.mrf.mxu0
    %v1194 = vadd.f32 0.0, %v1193
    %v1195 = vpop.f32.mrf.mxu0
    %1196 = vdwg.mxu0
    %s1197 = scalar_lea.vmem %s4, 32
    %v1198 = vld [vmem:[%s1197] sm:$0xff]
    %v1199 = vld [vmem:[%s1197 + $0x8] sm:$0xff]
    %v1201 = vsel %vm277, %v1183, 0
    %v1204 = vsel %vm277, %v1186, 0
    %v1207 = vsel %vm277, %v1191, 0
    %v1210 = vsel %vm277, %v1194, 0
    %1212 = vmatprep.subr.mxu0 0.0
    %1213 = vmatpush1.msra.mxu0 0.0
    %1214 = vmatprep.subr.mxu0 0.0
    %1215 = vmatpush1.msra.mxu0 0.0
    %1216 = vmatprep.subr.mxu0 0.0
    %1217 = vmatpush1.msra.mxu0 0.0
    %1218 = vmatprep.subr.mxu0 0.0
    %1219 = vmatpush1.msra.mxu0 0.0
    %1220 = vmatprep.subr.mxu0 0.0
    %1221 = vmatpush1.msra.mxu0 0.0
    %1222 = vmatprep.subr.mxu0 0.0
    %1223 = vmatpush1.msra.mxu0 0.0
    %1224 = vmatprep.subr.mxu0 0.0
    %1225 = vmatpush1.msra.mxu0 0.0
    %1226 = vmatprep.subr.mxu0 0.0
    %1227 = vmatpush1.msra.mxu0 0.0
    %1228 = vmatprep.subr.mxu0 0.0
    %1229 = vmatpush1.msra.mxu0 0.0
    %1230 = vmatprep.subr.mxu0 0.0
    %1231 = vmatpush1.msra.mxu0 0.0
    %1232 = vmatprep.subr.mxu0 0.0
    %1233 = vmatpush1.msra.mxu0 0.0
    %1234 = vmatprep.subr.mxu0 0.0
    %1235 = vmatpush1.msra.mxu0 0.0
    %1236 = vmatprep.subr.mxu0 0.0
    %1237 = vmatpush1.msra.mxu0 0.0
    %1238 = vmatprep.subr.mxu0 0.0
    %1239 = vmatpush1.msra.mxu0 0.0
    %1240 = vmatprep.subr.mxu0 0.0
    %1241 = vmatpush1.msra.mxu0 0.0
    %1242 = vmatprep.subr.mxu0 0.0
    %1243 = vmatpush1.msra.mxu0 %v1199
    %1244 = vmatprep.subr.mxu0 0.0
    %1245 = vmatpush2.msra.mxu0 0.0
    %1246 = vmatprep.subr.mxu0 0.0
    %1247 = vmatpush2.msra.mxu0 0.0
    %1248 = vmatprep.subr.mxu0 0.0
    %1249 = vmatpush2.msra.mxu0 0.0
    %1250 = vmatprep.subr.mxu0 0.0
    %1251 = vmatpush2.msra.mxu0 0.0
    %1252 = vmatprep.subr.mxu0 0.0
    %1253 = vmatpush2.msra.mxu0 0.0
    %1254 = vmatprep.subr.mxu0 0.0
    %1255 = vmatpush2.msra.mxu0 0.0
    %1256 = vmatprep.subr.mxu0 0.0
    %1257 = vmatpush2.msra.mxu0 0.0
    %1258 = vmatprep.subr.mxu0 0.0
    %1259 = vmatpush2.msra.mxu0 0.0
    %1260 = vmatprep.subr.mxu0 0.0
    %1261 = vmatpush2.msra.mxu0 0.0
    %1262 = vmatprep.subr.mxu0 0.0
    %1263 = vmatpush2.msra.mxu0 0.0
    %1264 = vmatprep.subr.mxu0 0.0
    %1265 = vmatpush2.msra.mxu0 0.0
    %1266 = vmatprep.subr.mxu0 0.0
    %1267 = vmatpush2.msra.mxu0 0.0
    %1268 = vmatprep.subr.mxu0 0.0
    %1269 = vmatpush2.msra.mxu0 0.0
    %1270 = vmatprep.subr.mxu0 0.0
    %1271 = vmatpush2.msra.mxu0 0.0
    %1272 = vmatprep.subr.mxu0 0.0
    %1273 = vmatpush2.msra.mxu0 0.0
    %1274 = vmatprep.subr.mxu0 0.0
    %1275 = vmatpush2.msra.mxu0 0.0
    %1276 = vmatprep.mubr.f32.mxu0 0.0
    %1277 = vmatmul.mubr.f32.gmra.mxu0 %v1201
    %v1278 = vpop.f32.mrf.mxu0
    %v1279 = vadd.f32 0.0, %v1278
    %v1280 = vpop.f32.mrf.mxu0
    %1281 = vmatprep.mubr.f32.mxu0 0.0
    %1282 = vmatmul.mubr.f32.gmra.mxu0 %v1204
    %v1283 = vpop.f32.mrf.mxu0
    %v1284 = vadd.f32 0.0, %v1283
    %v1285 = vpop.f32.mrf.mxu0
    %1286 = vmatprep.mubr.f32.mxu0 0.0
    %1287 = vmatmul.mubr.f32.gmra.mxu0 %v1207
    %v1288 = vpop.f32.mrf.mxu0
    %v1289 = vadd.f32 0.0, %v1288
    %v1290 = vpop.f32.mrf.mxu0
    %1291 = vmatprep.mubr.f32.mxu0 0.0
    %1292 = vmatmul.mubr.f32.gmra.mxu0 %v1210
    %v1293 = vpop.f32.mrf.mxu0
    %v1294 = vadd.f32 0.0, %v1293
    %v1295 = vpop.f32.mrf.mxu0
    %1296 = vdwg.mxu0
    %v1298 = vsel %vm277, %v1167, 0
    %v1301 = vsel %vm277, %v1170, 0
    %v1304 = vsel %vm277, %v1175, 0
    %v1307 = vsel %vm277, %v1178, 0
    %1309 = vmatprep.subr.mxu0 0.0
    %1310 = vmatpush1.msra.mxu0 0.0
    %1311 = vmatprep.subr.mxu0 0.0
    %1312 = vmatpush1.msra.mxu0 0.0
    %1313 = vmatprep.subr.mxu0 0.0
    %1314 = vmatpush1.msra.mxu0 0.0
    %1315 = vmatprep.subr.mxu0 0.0
    %1316 = vmatpush1.msra.mxu0 0.0
    %1317 = vmatprep.subr.mxu0 0.0
    %1318 = vmatpush1.msra.mxu0 0.0
    %1319 = vmatprep.subr.mxu0 0.0
    %1320 = vmatpush1.msra.mxu0 0.0
    %1321 = vmatprep.subr.mxu0 0.0
    %1322 = vmatpush1.msra.mxu0 0.0
    %1323 = vmatprep.subr.mxu0 0.0
    %1324 = vmatpush1.msra.mxu0 0.0
    %1325 = vmatprep.subr.mxu0 0.0
    %1326 = vmatpush1.msra.mxu0 0.0
    %1327 = vmatprep.subr.mxu0 0.0
    %1328 = vmatpush1.msra.mxu0 0.0
    %1329 = vmatprep.subr.mxu0 0.0
    %1330 = vmatpush1.msra.mxu0 0.0
    %1331 = vmatprep.subr.mxu0 0.0
    %1332 = vmatpush1.msra.mxu0 0.0
    %1333 = vmatprep.subr.mxu0 0.0
    %1334 = vmatpush1.msra.mxu0 0.0
    %1335 = vmatprep.subr.mxu0 0.0
    %1336 = vmatpush1.msra.mxu0 0.0
    %1337 = vmatprep.subr.mxu0 0.0
    %1338 = vmatpush1.msra.mxu0 0.0
    %1339 = vmatprep.subr.mxu0 0.0
    %1340 = vmatpush1.msra.mxu0 %v1198
    %1341 = vmatprep.subr.mxu0 0.0
    %1342 = vmatpush2.msra.mxu0 0.0
    %1343 = vmatprep.subr.mxu0 0.0
    %1344 = vmatpush2.msra.mxu0 0.0
    %1345 = vmatprep.subr.mxu0 0.0
    %1346 = vmatpush2.msra.mxu0 0.0
    %1347 = vmatprep.subr.mxu0 0.0
    %1348 = vmatpush2.msra.mxu0 0.0
    %1349 = vmatprep.subr.mxu0 0.0
    %1350 = vmatpush2.msra.mxu0 0.0
    %1351 = vmatprep.subr.mxu0 0.0
    %1352 = vmatpush2.msra.mxu0 0.0
    %1353 = vmatprep.subr.mxu0 0.0
    %1354 = vmatpush2.msra.mxu0 0.0
    %1355 = vmatprep.subr.mxu0 0.0
    %1356 = vmatpush2.msra.mxu0 0.0
    %1357 = vmatprep.subr.mxu0 0.0
    %1358 = vmatpush2.msra.mxu0 0.0
    %1359 = vmatprep.subr.mxu0 0.0
    %1360 = vmatpush2.msra.mxu0 0.0
    %1361 = vmatprep.subr.mxu0 0.0
    %1362 = vmatpush2.msra.mxu0 0.0
    %1363 = vmatprep.subr.mxu0 0.0
    %1364 = vmatpush2.msra.mxu0 0.0
    %1365 = vmatprep.subr.mxu0 0.0
    %1366 = vmatpush2.msra.mxu0 0.0
    %1367 = vmatprep.subr.mxu0 0.0
    %1368 = vmatpush2.msra.mxu0 0.0
    %1369 = vmatprep.subr.mxu0 0.0
    %1370 = vmatpush2.msra.mxu0 0.0
    %1371 = vmatprep.subr.mxu0 0.0
    %1372 = vmatpush2.msra.mxu0 0.0
    %1373 = vmatprep.mubr.f32.mxu0 0.0
    %1374 = vmatmul.mubr.f32.gmra.mxu0 %v1298
    %v1375 = vpop.f32.mrf.mxu0
    %v1376 = vadd.f32 %v1279, %v1375
    %v1377 = vpop.f32.mrf.mxu0
    %1378 = vmatprep.mubr.f32.mxu0 0.0
    %1379 = vmatmul.mubr.f32.gmra.mxu0 %v1301
    %v1380 = vpop.f32.mrf.mxu0
    %v1381 = vadd.f32 %v1284, %v1380
    %v1382 = vpop.f32.mrf.mxu0
    %1383 = vmatprep.mubr.f32.mxu0 0.0
    %1384 = vmatmul.mubr.f32.gmra.mxu0 %v1304
    %v1385 = vpop.f32.mrf.mxu0
    %v1386 = vadd.f32 %v1289, %v1385
    %v1387 = vpop.f32.mrf.mxu0
    %1388 = vmatprep.mubr.f32.mxu0 0.0
    %1389 = vmatmul.mubr.f32.gmra.mxu0 %v1307
    %v1390 = vpop.f32.mrf.mxu0
    %v1391 = vadd.f32 %v1294, %v1390
    %v1392 = vpop.f32.mrf.mxu0
    %1393 = vdwg.mxu0
    %1394 = vrot.lane.b32.xlu0 %v158, 96
    %v1395 = vpop.permute.xlu0 %1394
    %1396 = vrot.lane.b32.xlu0 %v163, 96
    %v1397 = vpop.permute.xlu0 %1396
    %1398 = vrot.lane.b32.xlu0 %v168, 96
    %v1399 = vpop.permute.xlu0 %1398
    %1400 = vrot.lane.b32.xlu0 %v173, 96
    %v1401 = vpop.permute.xlu0 %1400
    %v1406 = vadd.f32 %v1376, %v1395
    %v1407 = vadd.f32 %v1381, %v1397
    %v1408 = vadd.f32 %v1386, %v1399
    %v1409 = vadd.f32 %v1391, %v1401
    %v1410 = vxor.u32 %v1406, 2147483648
    %v1411 = vxor.u32 %v1407, 2147483648
    %v1412 = vxor.u32 %v1408, 2147483648
    %v1413 = vxor.u32 %v1409, 2147483648
    %v1414 = vmul.f32 %v1410, 1.442695
    %v1415 = vpow.pop %v1414
    %v1416 = vmul.f32 %v1411, 1.442695
    %v1417 = vpow.pop %v1416
    %v1418 = vmul.f32 %v1412, 1.442695
    %v1419 = vpow.pop %v1418
    %v1420 = vmul.f32 %v1413, 1.442695
    %v1421 = vpow.pop %v1420
    %v1422 = vadd.f32 %v1415, 1.0
    %v1423 = vadd.f32 %v1417, 1.0
    %v1424 = vadd.f32 %v1419, 1.0
    %v1425 = vadd.f32 %v1421, 1.0
    %v1426 = vrcp.pop %v1422
    %v1427 = vmul.f32 1.0, %v1426
    %v1428 = vrcp.pop %v1423
    %v1429 = vmul.f32 1.0, %v1428
    %v1430 = vrcp.pop %v1424
    %v1431 = vmul.f32 1.0, %v1430
    %v1432 = vrcp.pop %v1425
    %v1433 = vmul.f32 1.0, %v1432
    %v1434 = vmax.f32 %v1406, 0.0
    %v1435 = vmax.f32 %v1407, 0.0
    %v1436 = vmax.f32 %v1408, 0.0
    %v1437 = vmax.f32 %v1409, 0.0
    %vm1438 = vcmp.ne.f32.partialorder %v1406, %v1406
    %vm1439 = vcmp.ne.f32.partialorder %v1407, %v1407
    %vm1440 = vcmp.ne.f32.partialorder %v1408, %v1408
    %vm1441 = vcmp.ne.f32.partialorder %v1409, %v1409
    %v1442 = vadd.f32 %v1406, 0.0
    %v1443 = vadd.f32 %v1407, 0.0
    %v1444 = vadd.f32 %v1408, 0.0
    %v1445 = vadd.f32 %v1409, 0.0
    %v1446 = vand.u32 2147483647, %v1406
    %v1447 = vand.u32 2147483647, %v1407
    %v1448 = vand.u32 2147483647, %v1408
    %v1449 = vand.u32 2147483647, %v1409
    %v1450 = vsub.f32 0.0, %v1446
    %v1451 = vsub.f32 0.0, %v1447
    %v1452 = vsub.f32 0.0, %v1448
    %v1453 = vsub.f32 0.0, %v1449
    %v1454 = vmul.f32 %v1450, 1.442695
    %v1455 = vpow.pop %v1454
    %v1456 = vmul.f32 %v1451, 1.442695
    %v1457 = vpow.pop %v1456
    %v1458 = vmul.f32 %v1452, 1.442695
    %v1459 = vpow.pop %v1458
    %v1460 = vmul.f32 %v1453, 1.442695
    %v1461 = vpow.pop %v1460
    %v1462 = vadd.f32 %v1455, 1.0
    %v1463 = vlog2.pop %v1462
    %v1464 = vmul.f32 %v1463, 0.6931472
    %v1465 = vmul.f32 -0.5, %v1455
    %v1466 = vadd.f32 %v1465, 1.0
    %v1467 = vmul.f32 %v1466, %v1455
    %v1468 = vand.u32 2147483647, %v1455
    %vm1469 = vcmp.lt.f32.partialorder %v1468, 0.0004427343
    %v1470 = vsel %vm1469, %v1467, %v1464
    %v1471 = vadd.f32 %v1457, 1.0
    %v1472 = vlog2.pop %v1471
    %v1473 = vmul.f32 %v1472, 0.6931472
    %v1474 = vmul.f32 -0.5, %v1457
    %v1475 = vadd.f32 %v1474, 1.0
    %v1476 = vmul.f32 %v1475, %v1457
    %v1477 = vand.u32 2147483647, %v1457
    %vm1478 = vcmp.lt.f32.partialorder %v1477, 0.0004427343
    %v1479 = vsel %vm1478, %v1476, %v1473
    %v1480 = vadd.f32 %v1459, 1.0
    %v1481 = vlog2.pop %v1480
    %v1482 = vmul.f32 %v1481, 0.6931472
    %v1483 = vmul.f32 -0.5, %v1459
    %v1484 = vadd.f32 %v1483, 1.0
    %v1485 = vmul.f32 %v1484, %v1459
    %v1486 = vand.u32 2147483647, %v1459
    %vm1487 = vcmp.lt.f32.partialorder %v1486, 0.0004427343
    %v1488 = vsel %vm1487, %v1485, %v1482
    %v1489 = vadd.f32 %v1461, 1.0
    %v1490 = vlog2.pop %v1489
    %v1491 = vmul.f32 %v1490, 0.6931472
    %v1492 = vmul.f32 -0.5, %v1461
    %v1493 = vadd.f32 %v1492, 1.0
    %v1494 = vmul.f32 %v1493, %v1461
    %v1495 = vand.u32 2147483647, %v1461
    %vm1496 = vcmp.lt.f32.partialorder %v1495, 0.0004427343
    %v1497 = vsel %vm1496, %v1494, %v1491
    %v1498 = vadd.f32 %v1434, %v1470
    %v1499 = vadd.f32 %v1435, %v1479
    %v1500 = vadd.f32 %v1436, %v1488
    %v1501 = vadd.f32 %v1437, %v1497
    %v1502 = vsel %vm1438, %v1442, %v1498
    %v1503 = vsel %vm1439, %v1443, %v1499
    %v1504 = vsel %vm1440, %v1444, %v1500
    %v1505 = vsel %vm1441, %v1445, %v1501
    %1510 = vrot.lane.b32.xlu0 %v1502, 120
    %v1511 = vpop.permute.xlu0 %1510
    %1512 = vrot.lane.b32.xlu0 %v1503, 120
    %v1513 = vpop.permute.xlu0 %1512
    %1514 = vrot.lane.b32.xlu0 %v1504, 120
    %v1515 = vpop.permute.xlu0 %1514
    %1516 = vrot.lane.b32.xlu0 %v1505, 120
    %v1517 = vpop.permute.xlu0 %1516
    %v1522 = vmul.f32 %v1427, %v1511
    %v1523 = vmul.f32 %v1429, %v1513
    %v1524 = vmul.f32 %v1431, %v1515
    %v1525 = vmul.f32 %v1433, %v1517
    %v1526 = vpack.c.bf16 %v1523, %v1522
    %v1527 = vpack.c.bf16 %v1525, %v1524
    %1528 = vmatprep.subr.bf16.mxu0 0
    %1529 = vmatpush1.bf16.msra.mxu0 0
    %1530 = vmatprep.subr.bf16.mxu0 0
    %1531 = vmatpush1.bf16.msra.mxu0 0
    %1532 = vmatprep.subr.bf16.mxu0 0
    %1533 = vmatpush1.bf16.msra.mxu0 0
    %1534 = vmatprep.subr.bf16.mxu0 0
    %1535 = vmatpush1.bf16.msra.mxu0 0
    %1536 = vmatprep.subr.bf16.mxu0 0
    %1537 = vmatpush1.bf16.msra.mxu0 0
    %1538 = vmatprep.subr.bf16.mxu0 0
    %1539 = vmatpush1.bf16.msra.mxu0 0
    %1540 = vmatprep.subr.bf16.mxu0 0
    %1541 = vmatpush1.bf16.msra.mxu0 %v1527
    %1542 = vmatprep.subr.bf16.mxu0 0
    %1543 = vmatpush1.bf16.msra.mxu0 %v1526
    %1544 = vmatprep.subr.bf16.mxu0 0
    %1545 = vmatpush2.bf16.msra.mxu0 0
    %1546 = vmatprep.subr.bf16.mxu0 0
    %1547 = vmatpush2.bf16.msra.mxu0 0
    %1548 = vmatprep.subr.bf16.mxu0 0
    %1549 = vmatpush2.bf16.msra.mxu0 0
    %1550 = vmatprep.subr.bf16.mxu0 0
    %1551 = vmatpush2.bf16.msra.mxu0 0
    %1552 = vmatprep.subr.bf16.mxu0 0
    %1553 = vmatpush2.bf16.msra.mxu0 0
    %1554 = vmatprep.subr.bf16.mxu0 0
    %1555 = vmatpush2.bf16.msra.mxu0 0
    %1556 = vmatprep.subr.bf16.mxu0 0
    %1557 = vmatpush2.bf16.msra.mxu0 0
    %1558 = vmatprep.subr.bf16.mxu0 0
    %1559 = vmatpush2.bf16.msra.mxu0 0
    %1560 = vmatprep.mubr.bf16.mxu0 0
    %1561 = vmatmul.mubr.bf16.gmra.mxu0 %v614
    %v1562 = vpop.f32.mrf.mxu0
    %v1563 = vadd.f32 0.0, %v1562
    %v1564 = vpop.f32.mrf.mxu0
    %v1565 = vpop.f32.mrf.mxu0
    %v1566 = vadd.f32 0.0, %v1565
    %v1567 = vpop.f32.mrf.mxu0
    %1568 = vdwg.mxu0
    %v1569 = vld [vmem:[%s7 + $0x2] sm:$0x1]
    %v1570 = vlaneseq
    %v1571 = vshrl.u32 %v1570, 7
    %v1572 = vsub.s32 0, %v1571
    %v1573 = vrot.slane %v1569, %v1572
    %v1574 = vmul.f32 %v1563, %v1573
    %v1575 = vmul.f32 %v1566, %v1573
    %v1576 = vadd.f32 %v1129, %v1574
    %v1577 = vadd.f32 %v1130, %v1575
    %v1578 = vld [vmem:[%s8 + $0x2] sm:$0x1]
    %v1579 = vlaneseq
    %v1580 = vshrl.u32 %v1579, 7
    %v1581 = vsub.s32 0, %v1580
    %v1582 = vrot.slane %v1578, %v1581
    %v1583 = vadd.f32 %v1576, %v1582
    %v1584 = vadd.f32 %v1577, %v1582
    %v1585 = vpack.c.bf16 %v1584, %v1583
    %1586 = vmatprep.subr.bf16.mxu0 0
    %1587 = vmatpush1.bf16.msra.mxu0 0
    %1588 = vmatprep.subr.bf16.mxu0 0
    %1589 = vmatpush1.bf16.msra.mxu0 0
    %1590 = vmatprep.subr.bf16.mxu0 0
    %1591 = vmatpush1.bf16.msra.mxu0 0
    %1592 = vmatprep.subr.bf16.mxu0 0
    %1593 = vmatpush1.bf16.msra.mxu0 0
    %1594 = vmatprep.subr.bf16.mxu0 0
    %1595 = vmatpush1.bf16.msra.mxu0 0
    %1596 = vmatprep.subr.bf16.mxu0 0
    %1597 = vmatpush1.bf16.msra.mxu0 0
    %1598 = vmatprep.subr.bf16.mxu0 0
    %1599 = vmatpush1.bf16.msra.mxu0 0
    %1600 = vmatprep.subr.bf16.mxu0 0
    %1601 = vmatpush1.bf16.msra.mxu0 %v1585
    %1602 = vmatprep.subr.bf16.mxu0 0
    %1603 = vmatpush2.bf16.msra.mxu0 0
    %1604 = vmatprep.subr.bf16.mxu0 0
    %1605 = vmatpush2.bf16.msra.mxu0 0
    %1606 = vmatprep.subr.bf16.mxu0 0
    %1607 = vmatpush2.bf16.msra.mxu0 0
    %1608 = vmatprep.subr.bf16.mxu0 0
    %1609 = vmatpush2.bf16.msra.mxu0 0
    %1610 = vmatprep.subr.bf16.mxu0 0
    %1611 = vmatpush2.bf16.msra.mxu0 0
    %1612 = vmatprep.subr.bf16.mxu0 0
    %1613 = vmatpush2.bf16.msra.mxu0 0
    %1614 = vmatprep.subr.bf16.mxu0 0
    %1615 = vmatpush2.bf16.msra.mxu0 0
    %1616 = vmatprep.subr.bf16.mxu0 0
    %1617 = vmatpush2.bf16.msra.mxu0 0
    %1618 = vmatprep.mubr.bf16.mxu0 0
    %1619 = vmatmul.mubr.bf16.gmra.mxu0 %v199
    %v1620 = vpop.f32.mrf.mxu0
    %v1621 = vadd.f32 0.0, %v1620
    %v1622 = vpop.f32.mrf.mxu0
    %v1623 = vpop.f32.mrf.mxu0
    %v1624 = vadd.f32 0.0, %v1623
    %v1625 = vpop.f32.mrf.mxu0
    %1626 = vmatprep.mubr.bf16.mxu0 0
    %1627 = vmatmul.mubr.bf16.gmra.mxu0 %v202
    %v1628 = vpop.f32.mrf.mxu0
    %v1629 = vadd.f32 0.0, %v1628
    %v1630 = vpop.f32.mrf.mxu0
    %v1631 = vpop.f32.mrf.mxu0
    %v1632 = vadd.f32 0.0, %v1631
    %v1633 = vpop.f32.mrf.mxu0
    %1634 = vmatprep.mubr.bf16.mxu0 0
    %1635 = vmatmul.mubr.bf16.gmra.mxu0 %v205
    %v1636 = vpop.f32.mrf.mxu0
    %v1637 = vadd.f32 0.0, %v1636
    %v1638 = vpop.f32.mrf.mxu0
    %v1639 = vpop.f32.mrf.mxu0
    %v1640 = vadd.f32 0.0, %v1639
    %v1641 = vpop.f32.mrf.mxu0
    %1642 = vmatprep.mubr.bf16.mxu0 0
    %1643 = vmatmul.mubr.bf16.gmra.mxu0 %v208
    %v1644 = vpop.f32.mrf.mxu0
    %v1645 = vadd.f32 0.0, %v1644
    %v1646 = vpop.f32.mrf.mxu0
    %v1647 = vpop.f32.mrf.mxu0
    %v1648 = vadd.f32 0.0, %v1647
    %v1649 = vpop.f32.mrf.mxu0
    %1650 = vdwg.mxu0
    %s1651 = scalar_lea.vmem %s4, 48
    %v1652 = vld [vmem:[%s1651] sm:$0xff]
    %v1653 = vld [vmem:[%s1651 + $0x8] sm:$0xff]
    %v1655 = vsel %vm277, %v1637, 0
    %v1658 = vsel %vm277, %v1640, 0
    %v1661 = vsel %vm277, %v1645, 0
    %v1664 = vsel %vm277, %v1648, 0
    %1666 = vmatprep.subr.mxu0 0.0
    %1667 = vmatpush1.msra.mxu0 0.0
    %1668 = vmatprep.subr.mxu0 0.0
    %1669 = vmatpush1.msra.mxu0 0.0
    %1670 = vmatprep.subr.mxu0 0.0
    %1671 = vmatpush1.msra.mxu0 0.0
    %1672 = vmatprep.subr.mxu0 0.0
    %1673 = vmatpush1.msra.mxu0 0.0
    %1674 = vmatprep.subr.mxu0 0.0
    %1675 = vmatpush1.msra.mxu0 0.0
    %1676 = vmatprep.subr.mxu0 0.0
    %1677 = vmatpush1.msra.mxu0 0.0
    %1678 = vmatprep.subr.mxu0 0.0
    %1679 = vmatpush1.msra.mxu0 0.0
    %1680 = vmatprep.subr.mxu0 0.0
    %1681 = vmatpush1.msra.mxu0 0.0
    %1682 = vmatprep.subr.mxu0 0.0
    %1683 = vmatpush1.msra.mxu0 0.0
    %1684 = vmatprep.subr.mxu0 0.0
    %1685 = vmatpush1.msra.mxu0 0.0
    %1686 = vmatprep.subr.mxu0 0.0
    %1687 = vmatpush1.msra.mxu0 0.0
    %1688 = vmatprep.subr.mxu0 0.0
    %1689 = vmatpush1.msra.mxu0 0.0
    %1690 = vmatprep.subr.mxu0 0.0
    %1691 = vmatpush1.msra.mxu0 0.0
    %1692 = vmatprep.subr.mxu0 0.0
    %1693 = vmatpush1.msra.mxu0 0.0
    %1694 = vmatprep.subr.mxu0 0.0
    %1695 = vmatpush1.msra.mxu0 0.0
    %1696 = vmatprep.subr.mxu0 0.0
    %1697 = vmatpush1.msra.mxu0 %v1653
    %1698 = vmatprep.subr.mxu0 0.0
    %1699 = vmatpush2.msra.mxu0 0.0
    %1700 = vmatprep.subr.mxu0 0.0
    %1701 = vmatpush2.msra.mxu0 0.0
    %1702 = vmatprep.subr.mxu0 0.0
    %1703 = vmatpush2.msra.mxu0 0.0
    %1704 = vmatprep.subr.mxu0 0.0
    %1705 = vmatpush2.msra.mxu0 0.0
    %1706 = vmatprep.subr.mxu0 0.0
    %1707 = vmatpush2.msra.mxu0 0.0
    %1708 = vmatprep.subr.mxu0 0.0
    %1709 = vmatpush2.msra.mxu0 0.0
    %1710 = vmatprep.subr.mxu0 0.0
    %1711 = vmatpush2.msra.mxu0 0.0
    %1712 = vmatprep.subr.mxu0 0.0
    %1713 = vmatpush2.msra.mxu0 0.0
    %1714 = vmatprep.subr.mxu0 0.0
    %1715 = vmatpush2.msra.mxu0 0.0
    %1716 = vmatprep.subr.mxu0 0.0
    %1717 = vmatpush2.msra.mxu0 0.0
    %1718 = vmatprep.subr.mxu0 0.0
    %1719 = vmatpush2.msra.mxu0 0.0
    %1720 = vmatprep.subr.mxu0 0.0
    %1721 = vmatpush2.msra.mxu0 0.0
    %1722 = vmatprep.subr.mxu0 0.0
    %1723 = vmatpush2.msra.mxu0 0.0
    %1724 = vmatprep.subr.mxu0 0.0
    %1725 = vmatpush2.msra.mxu0 0.0
    %1726 = vmatprep.subr.mxu0 0.0
    %1727 = vmatpush2.msra.mxu0 0.0
    %1728 = vmatprep.subr.mxu0 0.0
    %1729 = vmatpush2.msra.mxu0 0.0
    %1730 = vmatprep.mubr.f32.mxu0 0.0
    %1731 = vmatmul.mubr.f32.gmra.mxu0 %v1655
    %v1732 = vpop.f32.mrf.mxu0
    %v1733 = vadd.f32 0.0, %v1732
    %v1734 = vpop.f32.mrf.mxu0
    %1735 = vmatprep.mubr.f32.mxu0 0.0
    %1736 = vmatmul.mubr.f32.gmra.mxu0 %v1658
    %v1737 = vpop.f32.mrf.mxu0
    %v1738 = vadd.f32 0.0, %v1737
    %v1739 = vpop.f32.mrf.mxu0
    %1740 = vmatprep.mubr.f32.mxu0 0.0
    %1741 = vmatmul.mubr.f32.gmra.mxu0 %v1661
    %v1742 = vpop.f32.mrf.mxu0
    %v1743 = vadd.f32 0.0, %v1742
    %v1744 = vpop.f32.mrf.mxu0
    %1745 = vmatprep.mubr.f32.mxu0 0.0
    %1746 = vmatmul.mubr.f32.gmra.mxu0 %v1664
    %v1747 = vpop.f32.mrf.mxu0
    %v1748 = vadd.f32 0.0, %v1747
    %v1749 = vpop.f32.mrf.mxu0
    %1750 = vdwg.mxu0
    %v1752 = vsel %vm277, %v1621, 0
    %v1755 = vsel %vm277, %v1624, 0
    %v1758 = vsel %vm277, %v1629, 0
    %v1761 = vsel %vm277, %v1632, 0
    %1763 = vmatprep.subr.mxu0 0.0
    %1764 = vmatpush1.msra.mxu0 0.0
    %1765 = vmatprep.subr.mxu0 0.0
    %1766 = vmatpush1.msra.mxu0 0.0
    %1767 = vmatprep.subr.mxu0 0.0
    %1768 = vmatpush1.msra.mxu0 0.0
    %1769 = vmatprep.subr.mxu0 0.0
    %1770 = vmatpush1.msra.mxu0 0.0
    %1771 = vmatprep.subr.mxu0 0.0
    %1772 = vmatpush1.msra.mxu0 0.0
    %1773 = vmatprep.subr.mxu0 0.0
    %1774 = vmatpush1.msra.mxu0 0.0
    %1775 = vmatprep.subr.mxu0 0.0
    %1776 = vmatpush1.msra.mxu0 0.0
    %1777 = vmatprep.subr.mxu0 0.0
    %1778 = vmatpush1.msra.mxu0 0.0
    %1779 = vmatprep.subr.mxu0 0.0
    %1780 = vmatpush1.msra.mxu0 0.0
    %1781 = vmatprep.subr.mxu0 0.0
    %1782 = vmatpush1.msra.mxu0 0.0
    %1783 = vmatprep.subr.mxu0 0.0
    %1784 = vmatpush1.msra.mxu0 0.0
    %1785 = vmatprep.subr.mxu0 0.0
    %1786 = vmatpush1.msra.mxu0 0.0
    %1787 = vmatprep.subr.mxu0 0.0
    %1788 = vmatpush1.msra.mxu0 0.0
    %1789 = vmatprep.subr.mxu0 0.0
    %1790 = vmatpush1.msra.mxu0 0.0
    %1791 = vmatprep.subr.mxu0 0.0
    %1792 = vmatpush1.msra.mxu0 0.0
    %1793 = vmatprep.subr.mxu0 0.0
    %1794 = vmatpush1.msra.mxu0 %v1652
    %1795 = vmatprep.subr.mxu0 0.0
    %1796 = vmatpush2.msra.mxu0 0.0
    %1797 = vmatprep.subr.mxu0 0.0
    %1798 = vmatpush2.msra.mxu0 0.0
    %1799 = vmatprep.subr.mxu0 0.0
    %1800 = vmatpush2.msra.mxu0 0.0
    %1801 = vmatprep.subr.mxu0 0.0
    %1802 = vmatpush2.msra.mxu0 0.0
    %1803 = vmatprep.subr.mxu0 0.0
    %1804 = vmatpush2.msra.mxu0 0.0
    %1805 = vmatprep.subr.mxu0 0.0
    %1806 = vmatpush2.msra.mxu0 0.0
    %1807 = vmatprep.subr.mxu0 0.0
    %1808 = vmatpush2.msra.mxu0 0.0
    %1809 = vmatprep.subr.mxu0 0.0
    %1810 = vmatpush2.msra.mxu0 0.0
    %1811 = vmatprep.subr.mxu0 0.0
    %1812 = vmatpush2.msra.mxu0 0.0
    %1813 = vmatprep.subr.mxu0 0.0
    %1814 = vmatpush2.msra.mxu0 0.0
    %1815 = vmatprep.subr.mxu0 0.0
    %1816 = vmatpush2.msra.mxu0 0.0
    %1817 = vmatprep.subr.mxu0 0.0
    %1818 = vmatpush2.msra.mxu0 0.0
    %1819 = vmatprep.subr.mxu0 0.0
    %1820 = vmatpush2.msra.mxu0 0.0
    %1821 = vmatprep.subr.mxu0 0.0
    %1822 = vmatpush2.msra.mxu0 0.0
    %1823 = vmatprep.subr.mxu0 0.0
    %1824 = vmatpush2.msra.mxu0 0.0
    %1825 = vmatprep.subr.mxu0 0.0
    %1826 = vmatpush2.msra.mxu0 0.0
    %1827 = vmatprep.mubr.f32.mxu0 0.0
    %1828 = vmatmul.mubr.f32.gmra.mxu0 %v1752
    %v1829 = vpop.f32.mrf.mxu0
    %v1830 = vadd.f32 %v1733, %v1829
    %v1831 = vpop.f32.mrf.mxu0
    %1832 = vmatprep.mubr.f32.mxu0 0.0
    %1833 = vmatmul.mubr.f32.gmra.mxu0 %v1755
    %v1834 = vpop.f32.mrf.mxu0
    %v1835 = vadd.f32 %v1738, %v1834
    %v1836 = vpop.f32.mrf.mxu0
    %1837 = vmatprep.mubr.f32.mxu0 0.0
    %1838 = vmatmul.mubr.f32.gmra.mxu0 %v1758
    %v1839 = vpop.f32.mrf.mxu0
    %v1840 = vadd.f32 %v1743, %v1839
    %v1841 = vpop.f32.mrf.mxu0
    %1842 = vmatprep.mubr.f32.mxu0 0.0
    %1843 = vmatmul.mubr.f32.gmra.mxu0 %v1761
    %v1844 = vpop.f32.mrf.mxu0
    %v1845 = vadd.f32 %v1748, %v1844
    %v1846 = vpop.f32.mrf.mxu0
    %1847 = vdwg.mxu0
    %1848 = vrot.lane.b32.xlu0 %v158, 80
    %v1849 = vpop.permute.xlu0 %1848
    %1850 = vrot.lane.b32.xlu0 %v163, 80
    %v1851 = vpop.permute.xlu0 %1850
    %1852 = vrot.lane.b32.xlu0 %v168, 80
    %v1853 = vpop.permute.xlu0 %1852
    %1854 = vrot.lane.b32.xlu0 %v173, 80
    %v1855 = vpop.permute.xlu0 %1854
    %v1860 = vadd.f32 %v1830, %v1849
    %v1861 = vadd.f32 %v1835, %v1851
    %v1862 = vadd.f32 %v1840, %v1853
    %v1863 = vadd.f32 %v1845, %v1855
    %v1864 = vxor.u32 %v1860, 2147483648
    %v1865 = vxor.u32 %v1861, 2147483648
    %v1866 = vxor.u32 %v1862, 2147483648
    %v1867 = vxor.u32 %v1863, 2147483648
    %v1868 = vmul.f32 %v1864, 1.442695
    %v1869 = vpow.pop %v1868
    %v1870 = vmul.f32 %v1865, 1.442695
    %v1871 = vpow.pop %v1870
    %v1872 = vmul.f32 %v1866, 1.442695
    %v1873 = vpow.pop %v1872
    %v1874 = vmul.f32 %v1867, 1.442695
    %v1875 = vpow.pop %v1874
    %v1876 = vadd.f32 %v1869, 1.0
    %v1877 = vadd.f32 %v1871, 1.0
    %v1878 = vadd.f32 %v1873, 1.0
    %v1879 = vadd.f32 %v1875, 1.0
    %v1880 = vrcp.pop %v1876
    %v1881 = vmul.f32 1.0, %v1880
    %v1882 = vrcp.pop %v1877
    %v1883 = vmul.f32 1.0, %v1882
    %v1884 = vrcp.pop %v1878
    %v1885 = vmul.f32 1.0, %v1884
    %v1886 = vrcp.pop %v1879
    %v1887 = vmul.f32 1.0, %v1886
    %v1888 = vmax.f32 %v1860, 0.0
    %v1889 = vmax.f32 %v1861, 0.0
    %v1890 = vmax.f32 %v1862, 0.0
    %v1891 = vmax.f32 %v1863, 0.0
    %vm1892 = vcmp.ne.f32.partialorder %v1860, %v1860
    %vm1893 = vcmp.ne.f32.partialorder %v1861, %v1861
    %vm1894 = vcmp.ne.f32.partialorder %v1862, %v1862
    %vm1895 = vcmp.ne.f32.partialorder %v1863, %v1863
    %v1896 = vadd.f32 %v1860, 0.0
    %v1897 = vadd.f32 %v1861, 0.0
    %v1898 = vadd.f32 %v1862, 0.0
    %v1899 = vadd.f32 %v1863, 0.0
    %v1900 = vand.u32 2147483647, %v1860
    %v1901 = vand.u32 2147483647, %v1861
    %v1902 = vand.u32 2147483647, %v1862
    %v1903 = vand.u32 2147483647, %v1863
    %v1904 = vsub.f32 0.0, %v1900
    %v1905 = vsub.f32 0.0, %v1901
    %v1906 = vsub.f32 0.0, %v1902
    %v1907 = vsub.f32 0.0, %v1903
    %v1908 = vmul.f32 %v1904, 1.442695
    %v1909 = vpow.pop %v1908
    %v1910 = vmul.f32 %v1905, 1.442695
    %v1911 = vpow.pop %v1910
    %v1912 = vmul.f32 %v1906, 1.442695
    %v1913 = vpow.pop %v1912
    %v1914 = vmul.f32 %v1907, 1.442695
    %v1915 = vpow.pop %v1914
    %v1916 = vadd.f32 %v1909, 1.0
    %v1917 = vlog2.pop %v1916
    %v1918 = vmul.f32 %v1917, 0.6931472
    %v1919 = vmul.f32 -0.5, %v1909
    %v1920 = vadd.f32 %v1919, 1.0
    %v1921 = vmul.f32 %v1920, %v1909
    %v1922 = vand.u32 2147483647, %v1909
    %vm1923 = vcmp.lt.f32.partialorder %v1922, 0.0004427343
    %v1924 = vsel %vm1923, %v1921, %v1918
    %v1925 = vadd.f32 %v1911, 1.0
    %v1926 = vlog2.pop %v1925
    %v1927 = vmul.f32 %v1926, 0.6931472
    %v1928 = vmul.f32 -0.5, %v1911
    %v1929 = vadd.f32 %v1928, 1.0
    %v1930 = vmul.f32 %v1929, %v1911
    %v1931 = vand.u32 2147483647, %v1911
    %vm1932 = vcmp.lt.f32.partialorder %v1931, 0.0004427343
    %v1933 = vsel %vm1932, %v1930, %v1927
    %v1934 = vadd.f32 %v1913, 1.0
    %v1935 = vlog2.pop %v1934
    %v1936 = vmul.f32 %v1935, 0.6931472
    %v1937 = vmul.f32 -0.5, %v1913
    %v1938 = vadd.f32 %v1937, 1.0
    %v1939 = vmul.f32 %v1938, %v1913
    %v1940 = vand.u32 2147483647, %v1913
    %vm1941 = vcmp.lt.f32.partialorder %v1940, 0.0004427343
    %v1942 = vsel %vm1941, %v1939, %v1936
    %v1943 = vadd.f32 %v1915, 1.0
    %v1944 = vlog2.pop %v1943
    %v1945 = vmul.f32 %v1944, 0.6931472
    %v1946 = vmul.f32 -0.5, %v1915
    %v1947 = vadd.f32 %v1946, 1.0
    %v1948 = vmul.f32 %v1947, %v1915
    %v1949 = vand.u32 2147483647, %v1915
    %vm1950 = vcmp.lt.f32.partialorder %v1949, 0.0004427343
    %v1951 = vsel %vm1950, %v1948, %v1945
    %v1952 = vadd.f32 %v1888, %v1924
    %v1953 = vadd.f32 %v1889, %v1933
    %v1954 = vadd.f32 %v1890, %v1942
    %v1955 = vadd.f32 %v1891, %v1951
    %v1956 = vsel %vm1892, %v1896, %v1952
    %v1957 = vsel %vm1893, %v1897, %v1953
    %v1958 = vsel %vm1894, %v1898, %v1954
    %v1959 = vsel %vm1895, %v1899, %v1955
    %1964 = vrot.lane.b32.xlu0 %v1956, 120
    %v1965 = vpop.permute.xlu0 %1964
    %1966 = vrot.lane.b32.xlu0 %v1957, 120
    %v1967 = vpop.permute.xlu0 %1966
    %1968 = vrot.lane.b32.xlu0 %v1958, 120
    %v1969 = vpop.permute.xlu0 %1968
    %1970 = vrot.lane.b32.xlu0 %v1959, 120
    %v1971 = vpop.permute.xlu0 %1970
    %v1976 = vmul.f32 %v1881, %v1965
    %v1977 = vmul.f32 %v1883, %v1967
    %v1978 = vmul.f32 %v1885, %v1969
    %v1979 = vmul.f32 %v1887, %v1971
    %v1980 = vpack.c.bf16 %v1977, %v1976
    %v1981 = vpack.c.bf16 %v1979, %v1978
    %1982 = vmatprep.subr.bf16.mxu0 0
    %1983 = vmatpush1.bf16.msra.mxu0 0
    %1984 = vmatprep.subr.bf16.mxu0 0
    %1985 = vmatpush1.bf16.msra.mxu0 0
    %1986 = vmatprep.subr.bf16.mxu0 0
    %1987 = vmatpush1.bf16.msra.mxu0 0
    %1988 = vmatprep.subr.bf16.mxu0 0
    %1989 = vmatpush1.bf16.msra.mxu0 0
    %1990 = vmatprep.subr.bf16.mxu0 0
    %1991 = vmatpush1.bf16.msra.mxu0 0
    %1992 = vmatprep.subr.bf16.mxu0 0
    %1993 = vmatpush1.bf16.msra.mxu0 0
    %1994 = vmatprep.subr.bf16.mxu0 0
    %1995 = vmatpush1.bf16.msra.mxu0 %v1981
    %1996 = vmatprep.subr.bf16.mxu0 0
    %1997 = vmatpush1.bf16.msra.mxu0 %v1980
    %1998 = vmatprep.subr.bf16.mxu0 0
    %1999 = vmatpush2.bf16.msra.mxu0 0
    %2000 = vmatprep.subr.bf16.mxu0 0
    %2001 = vmatpush2.bf16.msra.mxu0 0
    %2002 = vmatprep.subr.bf16.mxu0 0
    %2003 = vmatpush2.bf16.msra.mxu0 0
    %2004 = vmatprep.subr.bf16.mxu0 0
    %2005 = vmatpush2.bf16.msra.mxu0 0
    %2006 = vmatprep.subr.bf16.mxu0 0
    %2007 = vmatpush2.bf16.msra.mxu0 0
    %2008 = vmatprep.subr.bf16.mxu0 0
    %2009 = vmatpush2.bf16.msra.mxu0 0
    %2010 = vmatprep.subr.bf16.mxu0 0
    %2011 = vmatpush2.bf16.msra.mxu0 0
    %2012 = vmatprep.subr.bf16.mxu0 0
    %2013 = vmatpush2.bf16.msra.mxu0 0
    %2014 = vmatprep.mubr.bf16.mxu0 0
    %2015 = vmatmul.mubr.bf16.gmra.mxu0 %v614
    %v2016 = vpop.f32.mrf.mxu0
    %v2017 = vadd.f32 0.0, %v2016
    %v2018 = vpop.f32.mrf.mxu0
    %v2019 = vpop.f32.mrf.mxu0
    %v2020 = vadd.f32 0.0, %v2019
    %v2021 = vpop.f32.mrf.mxu0
    %2022 = vdwg.mxu0
    %v2023 = vld [vmem:[%s7 + $0x3] sm:$0x1]
    %v2024 = vlaneseq
    %v2025 = vshrl.u32 %v2024, 7
    %v2026 = vsub.s32 0, %v2025
    %v2027 = vrot.slane %v2023, %v2026
    %v2028 = vmul.f32 %v2017, %v2027
    %v2029 = vmul.f32 %v2020, %v2027
    %v2030 = vadd.f32 %v1583, %v2028
    %v2031 = vadd.f32 %v1584, %v2029
    %v2032 = vld [vmem:[%s8 + $0x3] sm:$0x1]
    %v2033 = vlaneseq
    %v2034 = vshrl.u32 %v2033, 7
    %v2035 = vsub.s32 0, %v2034
    %v2036 = vrot.slane %v2032, %v2035
    %v2037 = vadd.f32 %v2030, %v2036
    %v2038 = vadd.f32 %v2031, %v2036
    %v2039 = vld [vmem:[%s3] sm:$0x3]
    %v2041 = vsel %vm197, %v2039, 0
    %2043 = vmatprep.subr.mxu0 0.0
    %2044 = vmatpush1.msra.mxu0 0.0
    %2045 = vmatprep.subr.mxu0 0.0
    %2046 = vmatpush1.msra.mxu0 0.0
    %2047 = vmatprep.subr.mxu0 0.0
    %2048 = vmatpush1.msra.mxu0 0.0
    %2049 = vmatprep.subr.mxu0 0.0
    %2050 = vmatpush1.msra.mxu0 0.0
    %2051 = vmatprep.subr.mxu0 0.0
    %2052 = vmatpush1.msra.mxu0 0.0
    %2053 = vmatprep.subr.mxu0 0.0
    %2054 = vmatpush1.msra.mxu0 0.0
    %2055 = vmatprep.subr.mxu0 0.0
    %2056 = vmatpush1.msra.mxu0 0.0
    %2057 = vmatprep.subr.mxu0 0.0
    %2058 = vmatpush1.msra.mxu0 0.0
    %2059 = vmatprep.subr.mxu0 0.0
    %2060 = vmatpush1.msra.mxu0 0.0
    %2061 = vmatprep.subr.mxu0 0.0
    %2062 = vmatpush1.msra.mxu0 0.0
    %2063 = vmatprep.subr.mxu0 0.0
    %2064 = vmatpush1.msra.mxu0 0.0
    %2065 = vmatprep.subr.mxu0 0.0
    %2066 = vmatpush1.msra.mxu0 0.0
    %2067 = vmatprep.subr.mxu0 0.0
    %2068 = vmatpush1.msra.mxu0 0.0
    %2069 = vmatprep.subr.mxu0 0.0
    %2070 = vmatpush1.msra.mxu0 0.0
    %2071 = vmatprep.subr.mxu0 0.0
    %2072 = vmatpush1.msra.mxu0 %v2038
    %2073 = vmatprep.subr.mxu0 0.0
    %2074 = vmatpush1.msra.mxu0 %v2037
    %2075 = vmatprep.subr.mxu0 0.0
    %2076 = vmatpush2.msra.mxu0 0.0
    %2077 = vmatprep.subr.mxu0 0.0
    %2078 = vmatpush2.msra.mxu0 0.0
    %2079 = vmatprep.subr.mxu0 0.0
    %2080 = vmatpush2.msra.mxu0 0.0
    %2081 = vmatprep.subr.mxu0 0.0
    %2082 = vmatpush2.msra.mxu0 0.0
    %2083 = vmatprep.subr.mxu0 0.0
    %2084 = vmatpush2.msra.mxu0 0.0
    %2085 = vmatprep.subr.mxu0 0.0
    %2086 = vmatpush2.msra.mxu0 0.0
    %2087 = vmatprep.subr.mxu0 0.0
    %2088 = vmatpush2.msra.mxu0 0.0
    %2089 = vmatprep.subr.mxu0 0.0
    %2090 = vmatpush2.msra.mxu0 0.0
    %2091 = vmatprep.subr.mxu0 0.0
    %2092 = vmatpush2.msra.mxu0 0.0
    %2093 = vmatprep.subr.mxu0 0.0
    %2094 = vmatpush2.msra.mxu0 0.0
    %2095 = vmatprep.subr.mxu0 0.0
    %2096 = vmatpush2.msra.mxu0 0.0
    %2097 = vmatprep.subr.mxu0 0.0
    %2098 = vmatpush2.msra.mxu0 0.0
    %2099 = vmatprep.subr.mxu0 0.0
    %2100 = vmatpush2.msra.mxu0 0.0
    %2101 = vmatprep.subr.mxu0 0.0
    %2102 = vmatpush2.msra.mxu0 0.0
    %2103 = vmatprep.subr.mxu0 0.0
    %2104 = vmatpush2.msra.mxu0 0.0
    %2105 = vmatprep.subr.mxu0 0.0
    %2106 = vmatpush2.msra.mxu0 0.0
    %2107 = vmatprep.mubr.f32.mxu0 0.0
    %2108 = vmatmul.mubr.f32.gmra.mxu0 %v2041
    %v2109 = vpop.f32.mrf.mxu0
    %v2110 = vadd.f32 0.0, %v2109
    %v2111 = vpop.f32.mrf.mxu0
    %2112 = vdwg.mxu0
    %v2113 = vld [vmem:[%s9] sm:$0xff]
    %v2114 = vld [vmem:[%s10] sm:$0x1]
    %v2116 = vlaneseq
    %v2117 = vshrl.u32 %v2116, 7
    %v2118 = vsub.s32 0, %v2117
    %v2119 = vrot.slane %v2114, %v2118
    %v2122 = vsel %vm277, %v2110, 0
    %2124 = vmatprep.subr.mxu0 0.0
    %2125 = vmatpush1.msra.mxu0 0.0
    %2126 = vmatprep.subr.mxu0 0.0
    %2127 = vmatpush1.msra.mxu0 0.0
    %2128 = vmatprep.subr.mxu0 0.0
    %2129 = vmatpush1.msra.mxu0 0.0
    %2130 = vmatprep.subr.mxu0 0.0
    %2131 = vmatpush1.msra.mxu0 0.0
    %2132 = vmatprep.subr.mxu0 0.0
    %2133 = vmatpush1.msra.mxu0 0.0
    %2134 = vmatprep.subr.mxu0 0.0
    %2135 = vmatpush1.msra.mxu0 0.0
    %2136 = vmatprep.subr.mxu0 0.0
    %2137 = vmatpush1.msra.mxu0 0.0
    %2138 = vmatprep.subr.mxu0 0.0
    %2139 = vmatpush1.msra.mxu0 0.0
    %2140 = vmatprep.subr.mxu0 0.0
    %2141 = vmatpush1.msra.mxu0 0.0
    %2142 = vmatprep.subr.mxu0 0.0
    %2143 = vmatpush1.msra.mxu0 0.0
    %2144 = vmatprep.subr.mxu0 0.0
    %2145 = vmatpush1.msra.mxu0 0.0
    %2146 = vmatprep.subr.mxu0 0.0
    %2147 = vmatpush1.msra.mxu0 0.0
    %2148 = vmatprep.subr.mxu0 0.0
    %2149 = vmatpush1.msra.mxu0 0.0
    %2150 = vmatprep.subr.mxu0 0.0
    %2151 = vmatpush1.msra.mxu0 0.0
    %2152 = vmatprep.subr.mxu0 0.0
    %2153 = vmatpush1.msra.mxu0 0.0
    %2154 = vmatprep.subr.mxu0 0.0
    %2155 = vmatpush1.msra.mxu0 %v2113
    %2156 = vmatprep.subr.mxu0 0.0
    %2157 = vmatpush2.msra.mxu0 0.0
    %2158 = vmatprep.subr.mxu0 0.0
    %2159 = vmatpush2.msra.mxu0 0.0
    %2160 = vmatprep.subr.mxu0 0.0
    %2161 = vmatpush2.msra.mxu0 0.0
    %2162 = vmatprep.subr.mxu0 0.0
    %2163 = vmatpush2.msra.mxu0 0.0
    %2164 = vmatprep.subr.mxu0 0.0
    %2165 = vmatpush2.msra.mxu0 0.0
    %2166 = vmatprep.subr.mxu0 0.0
    %2167 = vmatpush2.msra.mxu0 0.0
    %2168 = vmatprep.subr.mxu0 0.0
    %2169 = vmatpush2.msra.mxu0 0.0
    %2170 = vmatprep.subr.mxu0 0.0
    %2171 = vmatpush2.msra.mxu0 0.0
    %2172 = vmatprep.subr.mxu0 0.0
    %2173 = vmatpush2.msra.mxu0 0.0
    %2174 = vmatprep.subr.mxu0 0.0
    %2175 = vmatpush2.msra.mxu0 0.0
    %2176 = vmatprep.subr.mxu0 0.0
    %2177 = vmatpush2.msra.mxu0 0.0
    %2178 = vmatprep.subr.mxu0 0.0
    %2179 = vmatpush2.msra.mxu0 0.0
    %2180 = vmatprep.subr.mxu0 0.0
    %2181 = vmatpush2.msra.mxu0 0.0
    %2182 = vmatprep.subr.mxu0 0.0
    %2183 = vmatpush2.msra.mxu0 0.0
    %2184 = vmatprep.subr.mxu0 0.0
    %2185 = vmatpush2.msra.mxu0 0.0
    %2186 = vmatprep.subr.mxu0 0.0
    %2187 = vmatpush2.msra.mxu0 0.0
    %2188 = vmatprep.mubr.f32.mxu0 0.0
    %2189 = vmatmul.mubr.f32.gmra.mxu0 %v2122
    %v2190 = vpop.f32.mrf.mxu0
    %v2191 = vadd.f32 %v2119, %v2190
    %v2192 = vpop.f32.mrf.mxu0
    %2193 = vdwg.mxu0
    %v2194 = vmax.f32 %v2191, 0.0
    %v2195 = vld [vmem:[%s11] sm:$0xff]
    %v2196 = vld [vmem:[%s11 + $0x8] sm:$0xff]
    %v2197 = vld [vmem:[%s11 + $0x10] sm:$0xff]
    %v2198 = vld [vmem:[%s11 + $0x18] sm:$0xff]
    %v2199 = vld [vmem:[%s12] sm:$0x1]
    %v2201 = vlaneseq
    %v2202 = vshrl.u32 %v2201, 7
    %v2203 = vsub.s32 0, %v2202
    %v2204 = vrot.slane %v2199, %v2203
    %v2207 = vsel %vm612, %v2194, 0
    %2209 = vmatprep.subr.mxu0 0.0
    %2210 = vmatpush1.msra.mxu0 0.0
    %2211 = vmatprep.subr.mxu0 0.0
    %2212 = vmatpush1.msra.mxu0 0.0
    %2213 = vmatprep.subr.mxu0 0.0
    %2214 = vmatpush1.msra.mxu0 0.0
    %2215 = vmatprep.subr.mxu0 0.0
    %2216 = vmatpush1.msra.mxu0 0.0
    %2217 = vmatprep.subr.mxu0 0.0
    %2218 = vmatpush1.msra.mxu0 0.0
    %2219 = vmatprep.subr.mxu0 0.0
    %2220 = vmatpush1.msra.mxu0 0.0
    %2221 = vmatprep.subr.mxu0 0.0
    %2222 = vmatpush1.msra.mxu0 0.0
    %2223 = vmatprep.subr.mxu0 0.0
    %2224 = vmatpush1.msra.mxu0 0.0
    %2225 = vmatprep.subr.mxu0 0.0
    %2226 = vmatpush1.msra.mxu0 0.0
    %2227 = vmatprep.subr.mxu0 0.0
    %2228 = vmatpush1.msra.mxu0 0.0
    %2229 = vmatprep.subr.mxu0 0.0
    %2230 = vmatpush1.msra.mxu0 0.0
    %2231 = vmatprep.subr.mxu0 0.0
    %2232 = vmatpush1.msra.mxu0 0.0
    %2233 = vmatprep.subr.mxu0 0.0
    %2234 = vmatpush1.msra.mxu0 %v2198
    %2235 = vmatprep.subr.mxu0 0.0
    %2236 = vmatpush1.msra.mxu0 %v2197
    %2237 = vmatprep.subr.mxu0 0.0
    %2238 = vmatpush1.msra.mxu0 %v2196
    %2239 = vmatprep.subr.mxu0 0.0
    %2240 = vmatpush1.msra.mxu0 %v2195
    %2241 = vmatprep.subr.mxu0 0.0
    %2242 = vmatpush2.msra.mxu0 0.0
    %2243 = vmatprep.subr.mxu0 0.0
    %2244 = vmatpush2.msra.mxu0 0.0
    %2245 = vmatprep.subr.mxu0 0.0
    %2246 = vmatpush2.msra.mxu0 0.0
    %2247 = vmatprep.subr.mxu0 0.0
    %2248 = vmatpush2.msra.mxu0 0.0
    %2249 = vmatprep.subr.mxu0 0.0
    %2250 = vmatpush2.msra.mxu0 0.0
    %2251 = vmatprep.subr.mxu0 0.0
    %2252 = vmatpush2.msra.mxu0 0.0
    %2253 = vmatprep.subr.mxu0 0.0
    %2254 = vmatpush2.msra.mxu0 0.0
    %2255 = vmatprep.subr.mxu0 0.0
    %2256 = vmatpush2.msra.mxu0 0.0
    %2257 = vmatprep.subr.mxu0 0.0
    %2258 = vmatpush2.msra.mxu0 0.0
    %2259 = vmatprep.subr.mxu0 0.0
    %2260 = vmatpush2.msra.mxu0 0.0
    %2261 = vmatprep.subr.mxu0 0.0
    %2262 = vmatpush2.msra.mxu0 0.0
    %2263 = vmatprep.subr.mxu0 0.0
    %2264 = vmatpush2.msra.mxu0 0.0
    %2265 = vmatprep.subr.mxu0 0.0
    %2266 = vmatpush2.msra.mxu0 0.0
    %2267 = vmatprep.subr.mxu0 0.0
    %2268 = vmatpush2.msra.mxu0 0.0
    %2269 = vmatprep.subr.mxu0 0.0
    %2270 = vmatpush2.msra.mxu0 0.0
    %2271 = vmatprep.subr.mxu0 0.0
    %2272 = vmatpush2.msra.mxu0 0.0
    %2273 = vmatprep.mubr.f32.mxu0 0.0
    %2274 = vmatmul.mubr.f32.gmra.mxu0 %v2207
    %v2275 = vpop.f32.mrf.mxu0
    %v2276 = vadd.f32 %v2204, %v2275
    %v2277 = vpop.f32.mrf.mxu0
    %2278 = vdwg.mxu0
    %v2279 = vmax.f32 %v2276, 0.0
    %v2280 = vld [vmem:[%s13] sm:$0xff]
    %v2281 = vld [vmem:[%s13 + $0x8] sm:$0xff]
    %v2282 = vld [vmem:[%s14] sm:$0x1]
    %v2284 = vlaneseq
    %v2285 = vshrl.u32 %v2284, 7
    %v2286 = vsub.s32 0, %v2285
    %v2287 = vrot.slane %v2282, %v2286
    %v2290 = vsel %vm197, %v2279, 0
    %2292 = vmatprep.subr.mxu0 0.0
    %2293 = vmatpush1.msra.mxu0 0.0
    %2294 = vmatprep.subr.mxu0 0.0
    %2295 = vmatpush1.msra.mxu0 0.0
    %2296 = vmatprep.subr.mxu0 0.0
    %2297 = vmatpush1.msra.mxu0 0.0
    %2298 = vmatprep.subr.mxu0 0.0
    %2299 = vmatpush1.msra.mxu0 0.0
    %2300 = vmatprep.subr.mxu0 0.0
    %2301 = vmatpush1.msra.mxu0 0.0
    %2302 = vmatprep.subr.mxu0 0.0
    %2303 = vmatpush1.msra.mxu0 0.0
    %2304 = vmatprep.subr.mxu0 0.0
    %2305 = vmatpush1.msra.mxu0 0.0
    %2306 = vmatprep.subr.mxu0 0.0
    %2307 = vmatpush1.msra.mxu0 0.0
    %2308 = vmatprep.subr.mxu0 0.0
    %2309 = vmatpush1.msra.mxu0 0.0
    %2310 = vmatprep.subr.mxu0 0.0
    %2311 = vmatpush1.msra.mxu0 0.0
    %2312 = vmatprep.subr.mxu0 0.0
    %2313 = vmatpush1.msra.mxu0 0.0
    %2314 = vmatprep.subr.mxu0 0.0
    %2315 = vmatpush1.msra.mxu0 0.0
    %2316 = vmatprep.subr.mxu0 0.0
    %2317 = vmatpush1.msra.mxu0 0.0
    %2318 = vmatprep.subr.mxu0 0.0
    %2319 = vmatpush1.msra.mxu0 0.0
    %2320 = vmatprep.subr.mxu0 0.0
    %2321 = vmatpush1.msra.mxu0 %v2281
    %2322 = vmatprep.subr.mxu0 0.0
    %2323 = vmatpush1.msra.mxu0 %v2280
    %2324 = vmatprep.subr.mxu0 0.0
    %2325 = vmatpush2.msra.mxu0 0.0
    %2326 = vmatprep.subr.mxu0 0.0
    %2327 = vmatpush2.msra.mxu0 0.0
    %2328 = vmatprep.subr.mxu0 0.0
    %2329 = vmatpush2.msra.mxu0 0.0
    %2330 = vmatprep.subr.mxu0 0.0
    %2331 = vmatpush2.msra.mxu0 0.0
    %2332 = vmatprep.subr.mxu0 0.0
    %2333 = vmatpush2.msra.mxu0 0.0
    %2334 = vmatprep.subr.mxu0 0.0
    %2335 = vmatpush2.msra.mxu0 0.0
    %2336 = vmatprep.subr.mxu0 0.0
    %2337 = vmatpush2.msra.mxu0 0.0
    %2338 = vmatprep.subr.mxu0 0.0
    %2339 = vmatpush2.msra.mxu0 0.0
    %2340 = vmatprep.subr.mxu0 0.0
    %2341 = vmatpush2.msra.mxu0 0.0
    %2342 = vmatprep.subr.mxu0 0.0
    %2343 = vmatpush2.msra.mxu0 0.0
    %2344 = vmatprep.subr.mxu0 0.0
    %2345 = vmatpush2.msra.mxu0 0.0
    %2346 = vmatprep.subr.mxu0 0.0
    %2347 = vmatpush2.msra.mxu0 0.0
    %2348 = vmatprep.subr.mxu0 0.0
    %2349 = vmatpush2.msra.mxu0 0.0
    %2350 = vmatprep.subr.mxu0 0.0
    %2351 = vmatpush2.msra.mxu0 0.0
    %2352 = vmatprep.subr.mxu0 0.0
    %2353 = vmatpush2.msra.mxu0 0.0
    %2354 = vmatprep.subr.mxu0 0.0
    %2355 = vmatpush2.msra.mxu0 0.0
    %2356 = vmatprep.mubr.f32.mxu0 0.0
    %2357 = vmatmul.mubr.f32.gmra.mxu0 %v2290
    %v2358 = vpop.f32.mrf.mxu0
    %v2359 = vadd.f32 %v2287, %v2358
    %v2360 = vpop.f32.mrf.mxu0
    %2361 = vdwg.mxu0
    %vm2362 = vcmask 25600
    %2363 = vst.msk [vmem:[#allocation2] sm:$0x3] %vm2362, %v2359
    // Predicated region
    $region62: #{tpu_custom_call.1} parent=1 // pred_check
      _
    $region63: #{tpu_custom_call.1} parent=1 // pred_check_branch
      %2365 = sbr.rel (0) target = $region65
    $region64: #{tpu_custom_call.1} parent=1 // pred_region
      %s2367 = ssub.s32 32, 32
      %2368 = vsyncadd [#allocation3], %s2367
      %s2370 = sshll.u32 [#allocation2], 4
      %s2371 = int_to_ptr.vmem [resolvable:$true] %s2370
      %2373 = dma.vmem_to_hbm [thread:$0]  %s2371, 32, %s15, [#allocation3]
    $region65: #{tpu_custom_call.1} parent=1 // pred_fallthru
      _
    // Predicated region
    $region66: #{tpu_custom_call.1} parent=1 // pred_check
      _
    $region67: #{tpu_custom_call.1} parent=1 // pred_check_branch
      %2375 = sbr.rel (0) target = $region69
    $region68: #{tpu_custom_call.1} parent=1 // pred_region
      %2376 = dma.done [#allocation3], 32
    $region69: #{tpu_custom_call.1} parent=1 // pred_fallthru
      _
    %2377 = vsyncpa [#allocation3], 1

</llo_original>
